<compile_context>
chip_gen: v6e
topology: v6e:2x2x1
jax: 0.10.0
libtpu: 0.0.40
codegen_flags: <defaults>
</compile_context>

<pallas_src>
import jax
import jax.numpy as jnp
from jax.experimental import pallas as pl
from jax.experimental.pallas import tpu as pltpu

SEG = 128  # lane-aligned segment width for packed weights / activations


def make_net_kernel(R, seg):
    """Fused 2-layer RGCN forward: relu(conv1) -> dropout(eval=id) -> relu(conv2)."""

    def net_kernel(adj_ref, x_ref, w1_ref, b1_ref, w2_ref, b2_ref, out_ref):
        def rgcn_relu(h_bf16, w_ref, b_ref):
            # One lane-dense packed matmul: [N, seg] @ [seg, (R+1)*seg],
            # bf16 operands on the MXU with f32 accumulation.
            #   lanes [0:seg]                 -> h @ w_root   (zero-padded to seg)
            #   lanes [(r+1)*seg:(r+2)*seg]   -> h @ w_rel[r] (zero-padded to seg)
            hw = jnp.dot(h_bf16, w_ref[...], preferred_element_type=jnp.float32)
            acc = hw[:, 0:seg] + b_ref[...]
            for r in range(R):  # static, unrolled relation loop (R is tiny)
                # 128-lane-aligned slice -> no sub-vreg lane shuffles before the
                # MXU push; message matmul is bf16 x bf16 with f32 accumulation.
                msg_rhs = hw[:, (r + 1) * seg:(r + 2) * seg].astype(jnp.bfloat16)
                acc = acc + jnp.dot(
                    adj_ref[r], msg_rhs, preferred_element_type=jnp.float32
                )
            return jnp.maximum(acc, 0.0)

        h1 = rgcn_relu(x_ref[...], w1_ref, b1_ref)
        # TODO(synk): nn.Dropout is identity in eval mode; training-mode
        # stochastic dropout (pltpu.prng_seed / prng_random_bits) not implemented.
        h2 = rgcn_relu(h1.astype(jnp.bfloat16), w2_ref, b2_ref)

        # Lane-dense (seg-wide) unmasked output store; the wrapper narrows to D.
        out_ref[...] = h2

    return net_kernel


def rgcn_net_fused(x_pad, adj_bf16, w1_pad, b1_pad, w2_pad, b2_pad):
    """Run the fused 2-layer RGCN kernel. Returns [N, SEG] f32 activations."""
    N, seg = x_pad.shape
    R = adj_bf16.shape[0]
    DW = w1_pad.shape[1]  # (R + 1) * seg, packed weight width

    b1_2d = b1_pad.reshape(1, seg)
    b2_2d = b2_pad.reshape(1, seg)

    # Advisory cost estimate: 2 layers of (packed X@W) + R message matmuls.
    flops = 2 * (2 * N * seg * DW + 2 * R * N * N * seg)
    bytes_accessed = (
        2 * adj_bf16.size            # bf16 adjacency
        + 2 * x_pad.size             # bf16 input
        + 2 * (w1_pad.size + w2_pad.size)
        + 4 * (b1_2d.size + b2_2d.size)
        + 4 * N * seg                # f32 output
    )
    # Explicit scoped-VMEM budget from the actual tile sizes (double-buffered
    # inputs + output + headroom for intermediates).
    tile_bytes = (
        2 * adj_bf16.size + 2 * x_pad.size + 2 * w1_pad.size + 2 * w2_pad.size
        + 4 * (b1_2d.size + b2_2d.size) + 4 * N * seg
    )
    vmem_limit = int(max(8 * 1024 * 1024, 4 * tile_bytes))

    out_padded = pl.pallas_call(
        make_net_kernel(R, seg),
        out_shape=jax.ShapeDtypeStruct((N, seg), jnp.float32),
        grid=(1,),
        in_specs=[
            pl.BlockSpec((R, N, N), lambda i: (0, 0, 0)),   # adj (all relations)
            pl.BlockSpec((N, seg), lambda i: (0, 0)),        # x (lane-padded)
            pl.BlockSpec((seg, DW), lambda i: (0, 0)),        # packed W, layer 1
            pl.BlockSpec((1, seg), lambda i: (0, 0)),         # bias 1
            pl.BlockSpec((seg, DW), lambda i: (0, 0)),        # packed W, layer 2
            pl.BlockSpec((1, seg), lambda i: (0, 0)),         # bias 2
        ],
        out_specs=pl.BlockSpec((N, seg), lambda i: (0, 0)),
        compiler_params=pltpu.CompilerParams(
            dimension_semantics=("arbitrary",),
            vmem_limit_bytes=vmem_limit,
        ),
        cost_estimate=pl.CostEstimate(
            flops=flops, transcendentals=0, bytes_accessed=bytes_accessed
        ),
    )(adj_bf16, x_pad, w1_pad, b1_2d, w2_pad, b2_2d)

    return out_padded


def pack_weights_padded(w_root, w_rel, seg):
    """[D, D] root + [R, D, D] per-relation -> lane-aligned bf16 [seg, (R+1)*seg].

    Each weight occupies the top-left D x D corner of its own 128-lane segment;
    padding rows/columns are zero so results are unchanged.
    """
    R, D, _ = w_rel.shape
    w_pad = jnp.zeros((seg, (R + 1) * seg), dtype=jnp.float32)
    w_pad = w_pad.at[:D, 0:D].set(w_root)
    for r in range(R):
        w_pad = w_pad.at[:D, (r + 1) * seg:(r + 1) * seg + D].set(w_rel[r])
    return w_pad.astype(jnp.bfloat16)


def build_dense_adjacency(edge_index, edge_type, num_nodes, num_rels):
    """Glue: dense per-relation adjacency with mean normalization (PyG RGCNConv)."""
    src = edge_index[0]
    dst = edge_index[1]
    adj = jnp.zeros((num_rels, num_nodes, num_nodes), dtype=jnp.float32)
    adj = adj.at[edge_type, dst, src].add(1.0)
    deg = adj.sum(axis=2, keepdims=True)
    adj = adj / jnp.maximum(deg, 1.0)
    return adj


def net_forward(x, edge_index, edge_type, params, num_rels):
    """Net.forward: relu(conv1(x)) -> dropout (identity, eval) -> relu(conv2(x))."""
    N, D = x.shape
    assert D <= SEG
    adj = build_dense_adjacency(edge_index, edge_type, N, num_rels)
    adj_bf16 = adj.astype(jnp.bfloat16)                 # bf16 MXU operand
    x_pad = (
        jnp.zeros((N, SEG), dtype=jnp.float32).at[:, :D].set(x).astype(jnp.bfloat16)
    )
    w1_pad = pack_weights_padded(params["w_root1"], params["w_rel1"], SEG)
    w2_pad = pack_weights_padded(params["w_root2"], params["w_rel2"], SEG)
    b1_pad = jnp.zeros((SEG,), dtype=jnp.float32).at[:D].set(params["b1"])
    b2_pad = jnp.zeros((SEG,), dtype=jnp.float32).at[:D].set(params["b2"])

    out_padded = rgcn_net_fused(x_pad, adj_bf16, w1_pad, b1_pad, w2_pad, b2_pad)
    # Narrow from the lane-dense padded store in the JAX wrapper.
    return out_padded[:, :D]


def rgcn_reference(x, adj, w_rel, w_root, bias):
    out = x @ w_root + bias.reshape(1, -1)
    for r in range(adj.shape[0]):
        out = out + adj[r] @ (x @ w_rel[r])
    return jnp.maximum(out, 0.0)


if __name__ == "__main__":
    key = jax.random.PRNGKey(0)

    # small config implied by the module: node_emb_dim, num_rels, drop
    N = 64          # nodes
    D = 32          # node_emb_dim
    R = 3           # num_rels
    E = 128         # edges

    k_x, k_src, k_dst, k_et, k1, k2, k3, k4 = jax.random.split(key, 8)
    x = jax.random.normal(k_x, (N, D), dtype=jnp.float32)
    edge_index = jnp.stack(
        [
            jax.random.randint(k_src, (E,), 0, N),
            jax.random.randint(k_dst, (E,), 0, N),
        ],
        axis=0,
    )
    edge_type = jax.random.randint(k_et, (E,), 0, R)

    # deterministic parameter init (glorot-ish scale, zero bias — like RGCNConv)
    scale = (2.0 / (D + D)) ** 0.5
    params = {
        "w_rel1": scale * jax.random.normal(k1, (R, D, D), dtype=jnp.float32),
        "w_root1": scale * jax.random.normal(k2, (D, D), dtype=jnp.float32),
        "b1": jnp.zeros((D,), dtype=jnp.float32),
        "w_rel2": scale * jax.random.normal(k3, (R, D, D), dtype=jnp.float32),
        "w_root2": scale * jax.random.normal(k4, (D, D), dtype=jnp.float32),
        "b2": jnp.zeros((D,), dtype=jnp.float32),
    }

    out = net_forward(x, edge_index, edge_type, params, R)
    out = jax.block_until_ready(out)

    # sanity check vs. pure-JAX f32 reference (bf16 MXU operands -> loosened tol)
    adj = build_dense_adjacency(edge_index, edge_type, N, R)
    ref1 = rgcn_reference(x, adj, params["w_rel1"], params["w_root1"], params["b1"])
    ref2 = rgcn_reference(ref1, adj, params["w_rel2"], params["w_root2"], params["b2"])
    assert out.shape == (N, D)
    assert jnp.allclose(out, ref2, atol=5e-2, rtol=5e-2)

    print("KERNEL_OK")
</pallas_src>

<mosaic_0001>
module attributes {stable_mosaic.version = 11 : i64} {
  func.func @net_kernel(%arg0: i32, %arg1: memref<3x64x64xbf16, #tpu.memory_space<vmem>>, %arg2: memref<64x128xbf16, #tpu.memory_space<vmem>>, %arg3: memref<128x512xbf16, #tpu.memory_space<vmem>>, %arg4: memref<1x128xf32, #tpu.memory_space<vmem>>, %arg5: memref<128x512xbf16, #tpu.memory_space<vmem>>, %arg6: memref<1x128xf32, #tpu.memory_space<vmem>>, %arg7: memref<64x128xf32, #tpu.memory_space<vmem>>) attributes {dimension_semantics = [#tpu.dimension_semantics<arbitrary>], iteration_bounds = array<i64: 1>, scalar_prefetch = 0 : i64, scratch_operands = 0 : i64, tpu.core_type = #tpu.core_type<tc>, window_params = [{pipeline_mode = #tpu.pipeline_mode<synchronous>, transform_indices = @transform_0, window_bounds = array<i64: 3, 64, 64>}, {pipeline_mode = #tpu.pipeline_mode<synchronous>, transform_indices = @transform_1, window_bounds = array<i64: 64, 128>}, {pipeline_mode = #tpu.pipeline_mode<synchronous>, transform_indices = @transform_2, window_bounds = array<i64: 128, 512>}, {pipeline_mode = #tpu.pipeline_mode<synchronous>, transform_indices = @transform_3, window_bounds = array<i64: 1, 128>}, {pipeline_mode = #tpu.pipeline_mode<synchronous>, transform_indices = @transform_4, window_bounds = array<i64: 128, 512>}, {pipeline_mode = #tpu.pipeline_mode<synchronous>, transform_indices = @transform_5, window_bounds = array<i64: 1, 128>}, {pipeline_mode = #tpu.pipeline_mode<synchronous>, transform_indices = @transform_6, window_bounds = array<i64: 64, 128>}]} {
    %c0 = arith.constant 0 : index
    %c0_0 = arith.constant 0 : index
    %0 = vector.load %arg2[%c0, %c0_0] : memref<64x128xbf16, #tpu.memory_space<vmem>>, vector<64x128xbf16>
    %c0_1 = arith.constant 0 : index
    %c0_2 = arith.constant 0 : index
    %1 = vector.load %arg3[%c0_1, %c0_2] : memref<128x512xbf16, #tpu.memory_space<vmem>>, vector<128x512xbf16>
    %cst = arith.constant dense<0.000000e+00> : vector<64x512xf32>
    %2 = tpu.matmul %0, %1, %cst {dimension_numbers = #tpu.dot_dimension_numbers<[1], [0], [0], [1], [0, 0, 1, 1], [], []>} : vector<64x128xbf16>, vector<128x512xbf16>, vector<64x512xf32> -> vector<64x512xf32>
    %3 = vector.extract_strided_slice %2 {offsets = [0, 0], sizes = [64, 128], strides = [1, 1]} : vector<64x512xf32> to vector<64x128xf32>
    %c0_3 = arith.constant 0 : index
    %c0_4 = arith.constant 0 : index
    %4 = vector.load %arg4[%c0_3, %c0_4] : memref<1x128xf32, #tpu.memory_space<vmem>>, vector<1x128xf32>
    %5 = vector.broadcast %4 : vector<1x128xf32> to vector<64x128xf32>
    %6 = arith.addf %3, %5 : vector<64x128xf32>
    %7 = vector.extract_strided_slice %2 {offsets = [0, 128], sizes = [64, 128], strides = [1, 1]} : vector<64x512xf32> to vector<64x128xf32>
    %8 = arith.truncf %7 : vector<64x128xf32> to vector<64x128xbf16>
    %c0_5 = arith.constant 0 : index
    %c0_6 = arith.constant 0 : index
    %c0_7 = arith.constant 0 : index
    %9 = vector.load %arg1[%c0_5, %c0_6, %c0_7] : memref<3x64x64xbf16, #tpu.memory_space<vmem>>, vector<1x64x64xbf16>
    %10 = vector.shape_cast %9 : vector<1x64x64xbf16> to vector<64x64xbf16>
    %cst_8 = arith.constant dense<0.000000e+00> : vector<64x128xf32>
    %11 = tpu.matmul %10, %8, %cst_8 {dimension_numbers = #tpu.dot_dimension_numbers<[1], [0], [0], [1], [0, 0, 1, 1], [], []>} : vector<64x64xbf16>, vector<64x128xbf16>, vector<64x128xf32> -> vector<64x128xf32>
    %12 = arith.addf %6, %11 : vector<64x128xf32>
    %13 = vector.extract_strided_slice %2 {offsets = [0, 256], sizes = [64, 128], strides = [1, 1]} : vector<64x512xf32> to vector<64x128xf32>
    %14 = arith.truncf %13 : vector<64x128xf32> to vector<64x128xbf16>
    %c1 = arith.constant 1 : index
    %c0_9 = arith.constant 0 : index
    %c0_10 = arith.constant 0 : index
    %15 = vector.load %arg1[%c1, %c0_9, %c0_10] : memref<3x64x64xbf16, #tpu.memory_space<vmem>>, vector<1x64x64xbf16>
    %16 = vector.shape_cast %15 : vector<1x64x64xbf16> to vector<64x64xbf16>
    %cst_11 = arith.constant dense<0.000000e+00> : vector<64x128xf32>
    %17 = tpu.matmul %16, %14, %cst_11 {dimension_numbers = #tpu.dot_dimension_numbers<[1], [0], [0], [1], [0, 0, 1, 1], [], []>} : vector<64x64xbf16>, vector<64x128xbf16>, vector<64x128xf32> -> vector<64x128xf32>
    %18 = arith.addf %12, %17 : vector<64x128xf32>
    %19 = vector.extract_strided_slice %2 {offsets = [0, 384], sizes = [64, 128], strides = [1, 1]} : vector<64x512xf32> to vector<64x128xf32>
    %20 = arith.truncf %19 : vector<64x128xf32> to vector<64x128xbf16>
    %c2 = arith.constant 2 : index
    %c0_12 = arith.constant 0 : index
    %c0_13 = arith.constant 0 : index
    %21 = vector.load %arg1[%c2, %c0_12, %c0_13] : memref<3x64x64xbf16, #tpu.memory_space<vmem>>, vector<1x64x64xbf16>
    %22 = vector.shape_cast %21 : vector<1x64x64xbf16> to vector<64x64xbf16>
    %cst_14 = arith.constant dense<0.000000e+00> : vector<64x128xf32>
    %23 = tpu.matmul %22, %20, %cst_14 {dimension_numbers = #tpu.dot_dimension_numbers<[1], [0], [0], [1], [0, 0, 1, 1], [], []>} : vector<64x64xbf16>, vector<64x128xbf16>, vector<64x128xf32> -> vector<64x128xf32>
    %24 = arith.addf %18, %23 : vector<64x128xf32>
    %cst_15 = arith.constant 0.000000e+00 : f32
    %25 = vector.broadcast %cst_15 : f32 to vector<64x128xf32>
    %26 = arith.maximumf %24, %25 : vector<64x128xf32>
    %27 = arith.truncf %26 : vector<64x128xf32> to vector<64x128xbf16>
    %c0_16 = arith.constant 0 : index
    %c0_17 = arith.constant 0 : index
    %28 = vector.load %arg5[%c0_16, %c0_17] : memref<128x512xbf16, #tpu.memory_space<vmem>>, vector<128x512xbf16>
    %cst_18 = arith.constant dense<0.000000e+00> : vector<64x512xf32>
    %29 = tpu.matmul %27, %28, %cst_18 {dimension_numbers = #tpu.dot_dimension_numbers<[1], [0], [0], [1], [0, 0, 1, 1], [], []>} : vector<64x128xbf16>, vector<128x512xbf16>, vector<64x512xf32> -> vector<64x512xf32>
    %30 = vector.extract_strided_slice %29 {offsets = [0, 0], sizes = [64, 128], strides = [1, 1]} : vector<64x512xf32> to vector<64x128xf32>
    %c0_19 = arith.constant 0 : index
    %c0_20 = arith.constant 0 : index
    %31 = vector.load %arg6[%c0_19, %c0_20] : memref<1x128xf32, #tpu.memory_space<vmem>>, vector<1x128xf32>
    %32 = vector.broadcast %31 : vector<1x128xf32> to vector<64x128xf32>
    %33 = arith.addf %30, %32 : vector<64x128xf32>
    %34 = vector.extract_strided_slice %29 {offsets = [0, 128], sizes = [64, 128], strides = [1, 1]} : vector<64x512xf32> to vector<64x128xf32>
    %35 = arith.truncf %34 : vector<64x128xf32> to vector<64x128xbf16>
    %c0_21 = arith.constant 0 : index
    %c0_22 = arith.constant 0 : index
    %c0_23 = arith.constant 0 : index
    %36 = vector.load %arg1[%c0_21, %c0_22, %c0_23] : memref<3x64x64xbf16, #tpu.memory_space<vmem>>, vector<1x64x64xbf16>
    %37 = vector.shape_cast %36 : vector<1x64x64xbf16> to vector<64x64xbf16>
    %cst_24 = arith.constant dense<0.000000e+00> : vector<64x128xf32>
    %38 = tpu.matmul %37, %35, %cst_24 {dimension_numbers = #tpu.dot_dimension_numbers<[1], [0], [0], [1], [0, 0, 1, 1], [], []>} : vector<64x64xbf16>, vector<64x128xbf16>, vector<64x128xf32> -> vector<64x128xf32>
    %39 = arith.addf %33, %38 : vector<64x128xf32>
    %40 = vector.extract_strided_slice %29 {offsets = [0, 256], sizes = [64, 128], strides = [1, 1]} : vector<64x512xf32> to vector<64x128xf32>
    %41 = arith.truncf %40 : vector<64x128xf32> to vector<64x128xbf16>
    %c1_25 = arith.constant 1 : index
    %c0_26 = arith.constant 0 : index
    %c0_27 = arith.constant 0 : index
    %42 = vector.load %arg1[%c1_25, %c0_26, %c0_27] : memref<3x64x64xbf16, #tpu.memory_space<vmem>>, vector<1x64x64xbf16>
    %43 = vector.shape_cast %42 : vector<1x64x64xbf16> to vector<64x64xbf16>
    %cst_28 = arith.constant dense<0.000000e+00> : vector<64x128xf32>
    %44 = tpu.matmul %43, %41, %cst_28 {dimension_numbers = #tpu.dot_dimension_numbers<[1], [0], [0], [1], [0, 0, 1, 1], [], []>} : vector<64x64xbf16>, vector<64x128xbf16>, vector<64x128xf32> -> vector<64x128xf32>
    %45 = arith.addf %39, %44 : vector<64x128xf32>
    %46 = vector.extract_strided_slice %29 {offsets = [0, 384], sizes = [64, 128], strides = [1, 1]} : vector<64x512xf32> to vector<64x128xf32>
    %47 = arith.truncf %46 : vector<64x128xf32> to vector<64x128xbf16>
    %c2_29 = arith.constant 2 : index
    %c0_30 = arith.constant 0 : index
    %c0_31 = arith.constant 0 : index
    %48 = vector.load %arg1[%c2_29, %c0_30, %c0_31] : memref<3x64x64xbf16, #tpu.memory_space<vmem>>, vector<1x64x64xbf16>
    %49 = vector.shape_cast %48 : vector<1x64x64xbf16> to vector<64x64xbf16>
    %cst_32 = arith.constant dense<0.000000e+00> : vector<64x128xf32>
    %50 = tpu.matmul %49, %47, %cst_32 {dimension_numbers = #tpu.dot_dimension_numbers<[1], [0], [0], [1], [0, 0, 1, 1], [], []>} : vector<64x64xbf16>, vector<64x128xbf16>, vector<64x128xf32> -> vector<64x128xf32>
    %51 = arith.addf %45, %50 : vector<64x128xf32>
    %cst_33 = arith.constant 0.000000e+00 : f32
    %52 = vector.broadcast %cst_33 : f32 to vector<64x128xf32>
    %53 = arith.maximumf %51, %52 : vector<64x128xf32>
    %c0_34 = arith.constant 0 : index
    %c0_35 = arith.constant 0 : index
    %54 = vector.load %arg7[%c0_34, %c0_35] : memref<64x128xf32, #tpu.memory_space<vmem>>, vector<64x128xf32>
    tpu.vector_store %arg7[%c0_34, %c0_35], %53 {strides = array<i32>} : memref<64x128xf32, #tpu.memory_space<vmem>>, vector<64x128xf32>,
    return
  }
  func.func @transform_0(%arg0: i32) -> (i32, i32, i32) {
    %c0_i32 = arith.constant 0 : i32
    %c0_i32_0 = arith.constant 0 : i32
    %c0_i32_1 = arith.constant 0 : i32
    %c0_i32_2 = arith.constant 0 : i32
    return %c0_i32, %c0_i32_0, %c0_i32_1 : i32, i32, i32
  }
  func.func @transform_1(%arg0: i32) -> (i32, i32) {
    %c0_i32 = arith.constant 0 : i32
    %c0_i32_0 = arith.constant 0 : i32
    %c0_i32_1 = arith.constant 0 : i32
    return %c0_i32, %c0_i32_0 : i32, i32
  }
  func.func @transform_2(%arg0: i32) -> (i32, i32) {
    %c0_i32 = arith.constant 0 : i32
    %c0_i32_0 = arith.constant 0 : i32
    %c0_i32_1 = arith.constant 0 : i32
    return %c0_i32, %c0_i32_0 : i32, i32
  }
  func.func @transform_3(%arg0: i32) -> (i32, i32) {
    %c0_i32 = arith.constant 0 : i32
    %c0_i32_0 = arith.constant 0 : i32
    %c0_i32_1 = arith.constant 0 : i32
    return %c0_i32, %c0_i32_0 : i32, i32
  }
  func.func @transform_4(%arg0: i32) -> (i32, i32) {
    %c0_i32 = arith.constant 0 : i32
    %c0_i32_0 = arith.constant 0 : i32
    %c0_i32_1 = arith.constant 0 : i32
    return %c0_i32, %c0_i32_0 : i32, i32
  }
  func.func @transform_5(%arg0: i32) -> (i32, i32) {
    %c0_i32 = arith.constant 0 : i32
    %c0_i32_0 = arith.constant 0 : i32
    %c0_i32_1 = arith.constant 0 : i32
    return %c0_i32, %c0_i32_0 : i32, i32
  }
  func.func @transform_6(%arg0: i32) -> (i32, i32) {
    %c0_i32 = arith.constant 0 : i32
    %c0_i32_0 = arith.constant 0 : i32
    %c0_i32_1 = arith.constant 0 : i32
    return %c0_i32, %c0_i32_0 : i32, i32
  }
}

</mosaic_0001>

<llo_original>
// kernel: tpu_custom_call.1
$region0: #{tpu_custom_call.1}
  #allocation0 [shape = 'u32[]', space=smem, size = 0x4, offset = 0x4, fixed_abs, tag = 'smem constant byte address 0x4 - core index']
  #allocation1 [shape = 'u32[144,128]{1,0:T(1,128)}', space=vmem, size = 0x12000, scoped, tag = 'internal scratch']
  %s0 = inlined_call_operand.hbm [shape: bf16[3,64,64], index: 0, kind: input, shape index: {}]
  %s1 = inlined_call_operand.hbm [shape: bf16[64,128], index: 1, kind: input, shape index: {}]
  %s2 = inlined_call_operand.hbm [shape: bf16[128,512], index: 2, kind: input, shape index: {}]
  %s3 = inlined_call_operand.vmem [shape: f32[1,128], index: 3, kind: input, shape index: {}]
  %s4 = inlined_call_operand.hbm [shape: bf16[128,512], index: 4, kind: input, shape index: {}]
  %s5 = inlined_call_operand.vmem [shape: f32[1,128], index: 5, kind: input, shape index: {}]
  %s6 = inlined_call_operand.hbm [shape: f32[64,128], index: 6, kind: output, shape index: {}]
  %s7 = sld [smem:[#allocation0]]
  $region50: #{tpu_custom_call.1} parent=0
    _
  %s9 = ssub.s32 1, %s7
  %s10 = scalar_select 0, %s9, %s7
  $region1: #{tpu_custom_call.1} parent=0
    #allocation2 [shape = 'u8[49152]{0}', space=vmem, size = 0xc000, scoped, tag = 'input window, operand 0, single buffered']
    #allocation3 [shape = 's32[1]{0}', space=sflag, size = 0x4, scoped, tag = 'scoped memory for tpu_custom_call.1']
    #allocation4 [shape = 's32[1]{0}', space=sflag, size = 0x4, scoped, tag = 'scoped memory for tpu_custom_call.1']
    #allocation5 [shape = 'u8[16384]{0}', space=vmem, size = 0x4000, scoped, tag = 'input window, operand 1, single buffered']
    #allocation6 [shape = 's32[1]{0}', space=sflag, size = 0x4, scoped, tag = 'scoped memory for tpu_custom_call.1']
    #allocation7 [shape = 'u8[131072]{0}', space=vmem, size = 0x20000, scoped, tag = 'input window, operand 2, single buffered']
    #allocation8 [shape = 'u8[131072]{0}', space=vmem, size = 0x20000, scoped, tag = 'input window, operand 4, single buffered']
    #allocation9 [shape = 's32[1]{0}', space=sflag, size = 0x4, scoped, tag = 'scoped memory for tpu_custom_call.1']
    #allocation10 [shape = 'u8[32768]{0}', space=vmem, size = 0x8000, scoped, tag = 'output window, operand 0, single buffered']
    %11 = vsyncpa [#allocation3], 0
    %12 = vsyncpa [#allocation6], 0
    %13 = vsyncpa [#allocation9], 0
    %14 = vsyncpa [#allocation4], 0
    // Predicated region
    $region2: #{tpu_custom_call.1} parent=1 // pred_check
      _
    $region3: #{tpu_custom_call.1} parent=1 // pred_check_branch
      %16 = sbr.rel (0) target = $region5
    $region4: #{tpu_custom_call.1} parent=1 // pred_region
      %s18 = ssub.s32 1536, 1536
      %19 = vsyncadd [#allocation3], %s18
      %s20 = sshll.u32 [#allocation2], 4
      %s21 = int_to_ptr.vmem [resolvable:$true] %s20
      %26 = dma.hbm_to_vmem [thread:$0]  %s0, 1536, %s21, [#allocation3], 64, 64, 4
    $region5: #{tpu_custom_call.1} parent=1 // pred_fallthru
      _
    // Predicated region
    $region6: #{tpu_custom_call.1} parent=1 // pred_check
      _
    $region7: #{tpu_custom_call.1} parent=1 // pred_check_branch
      %28 = sbr.rel (0) target = $region9
    $region8: #{tpu_custom_call.1} parent=1 // pred_region
      %s30 = ssub.s32 512, 512
      %31 = vsyncadd [#allocation6], %s30
      %s32 = sshll.u32 [#allocation5], 4
      %s33 = int_to_ptr.vmem [resolvable:$true] %s32
      %38 = dma.hbm_to_vmem [thread:$0]  %s1, 512, %s33, [#allocation6], 64, 64, 4
    $region9: #{tpu_custom_call.1} parent=1 // pred_fallthru
      _
    // Predicated region
    $region10: #{tpu_custom_call.1} parent=1 // pred_check
      _
    $region11: #{tpu_custom_call.1} parent=1 // pred_check_branch
      %40 = sbr.rel (0) target = $region13
    $region12: #{tpu_custom_call.1} parent=1 // pred_region
      %s42 = ssub.s32 4096, 4096
      %43 = vsyncadd [#allocation6], %s42
      %s44 = sshll.u32 [#allocation7], 4
      %s45 = int_to_ptr.vmem [resolvable:$true] %s44
      %50 = dma.hbm_to_vmem [thread:$0]  %s2, 4096, %s45, [#allocation6], 256, 256, 16
    $region13: #{tpu_custom_call.1} parent=1 // pred_fallthru
      _
    // Predicated region
    $region14: #{tpu_custom_call.1} parent=1 // pred_check
      _
    $region15: #{tpu_custom_call.1} parent=1 // pred_check_branch
      %52 = sbr.rel (0) target = $region17
    $region16: #{tpu_custom_call.1} parent=1 // pred_region
      _
    $region17: #{tpu_custom_call.1} parent=1 // pred_fallthru
      _
    // Predicated region
    $region18: #{tpu_custom_call.1} parent=1 // pred_check
      _
    $region19: #{tpu_custom_call.1} parent=1 // pred_check_branch
      %54 = sbr.rel (0) target = $region21
    $region20: #{tpu_custom_call.1} parent=1 // pred_region
      %s56 = ssub.s32 4096, 4096
      %57 = vsyncadd [#allocation9], %s56
      %s58 = sshll.u32 [#allocation8], 4
      %s59 = int_to_ptr.vmem [resolvable:$true] %s58
      %64 = dma.hbm_to_vmem [thread:$0]  %s4, 4096, %s59, [#allocation9], 256, 256, 16
    $region21: #{tpu_custom_call.1} parent=1 // pred_fallthru
      _
    // Predicated region
    $region22: #{tpu_custom_call.1} parent=1 // pred_check
      _
    $region23: #{tpu_custom_call.1} parent=1 // pred_check_branch
      %66 = sbr.rel (0) target = $region25
    $region24: #{tpu_custom_call.1} parent=1 // pred_region
      _
    $region25: #{tpu_custom_call.1} parent=1 // pred_fallthru
      _
    // Predicated region
    $region26: #{tpu_custom_call.1} parent=1 // pred_check
      _
    $region27: #{tpu_custom_call.1} parent=1 // pred_check_branch
      %68 = sbr.rel (0) target = $region29
    $region28: #{tpu_custom_call.1} parent=1 // pred_region
      %69 = dma.done [#allocation3], 1536
    $region29: #{tpu_custom_call.1} parent=1 // pred_fallthru
      _
    // Predicated region
    $region30: #{tpu_custom_call.1} parent=1 // pred_check
      _
    $region31: #{tpu_custom_call.1} parent=1 // pred_check_branch
      %71 = sbr.rel (0) target = $region33
    $region32: #{tpu_custom_call.1} parent=1 // pred_region
      %72 = dma.done [#allocation6], 512
    $region33: #{tpu_custom_call.1} parent=1 // pred_fallthru
      _
    // Predicated region
    $region34: #{tpu_custom_call.1} parent=1 // pred_check
      _
    $region35: #{tpu_custom_call.1} parent=1 // pred_check_branch
      %74 = sbr.rel (0) target = $region37
    $region36: #{tpu_custom_call.1} parent=1 // pred_region
      %75 = dma.done [#allocation6], 4096
    $region37: #{tpu_custom_call.1} parent=1 // pred_fallthru
      _
    // Predicated region
    $region38: #{tpu_custom_call.1} parent=1 // pred_check
      _
    $region39: #{tpu_custom_call.1} parent=1 // pred_check_branch
      %77 = sbr.rel (0) target = $region41
    $region40: #{tpu_custom_call.1} parent=1 // pred_region
      %78 = dma.done [#allocation9], 4096
    $region41: #{tpu_custom_call.1} parent=1 // pred_fallthru
      _
    %v80 = vld [vmem:[#allocation5] sm:$0xf]
    %v81 = vld [vmem:[#allocation5 + $0x4] sm:$0xf]
    %v82 = vld [vmem:[#allocation5 + $0x8] sm:$0xf]
    %v83 = vld [vmem:[#allocation5 + $0xc] sm:$0xf]
    %v84 = vld [vmem:[#allocation5 + $0x10] sm:$0xf]
    %v85 = vld [vmem:[#allocation5 + $0x14] sm:$0xf]
    %v86 = vld [vmem:[#allocation5 + $0x18] sm:$0xf]
    %v87 = vld [vmem:[#allocation5 + $0x1c] sm:$0xf]
    %v88 = vld [vmem:[#allocation7] sm:$0xff]
    %v89 = vld [vmem:[#allocation7 + $0x8] sm:$0xff]
    %v90 = vld [vmem:[#allocation7 + $0x10] sm:$0xff]
    %v91 = vld [vmem:[#allocation7 + $0x18] sm:$0xff]
    %v92 = vld [vmem:[#allocation7 + $0x20] sm:$0xff]
    %v93 = vld [vmem:[#allocation7 + $0x28] sm:$0xff]
    %v94 = vld [vmem:[#allocation7 + $0x30] sm:$0xff]
    %v95 = vld [vmem:[#allocation7 + $0x38] sm:$0xff]
    %v96 = vld [vmem:[#allocation7 + $0x40] sm:$0xff]
    %v97 = vld [vmem:[#allocation7 + $0x48] sm:$0xff]
    %v98 = vld [vmem:[#allocation7 + $0x50] sm:$0xff]
    %v99 = vld [vmem:[#allocation7 + $0x58] sm:$0xff]
    %v100 = vld [vmem:[#allocation7 + $0x60] sm:$0xff]
    %v101 = vld [vmem:[#allocation7 + $0x68] sm:$0xff]
    %v102 = vld [vmem:[#allocation7 + $0x70] sm:$0xff]
    %v103 = vld [vmem:[#allocation7 + $0x78] sm:$0xff]
    %v104 = vld [vmem:[#allocation7 + $0x80] sm:$0xff]
    %v105 = vld [vmem:[#allocation7 + $0x88] sm:$0xff]
    %v106 = vld [vmem:[#allocation7 + $0x90] sm:$0xff]
    %v107 = vld [vmem:[#allocation7 + $0x98] sm:$0xff]
    %v108 = vld [vmem:[#allocation7 + $0xa0] sm:$0xff]
    %v109 = vld [vmem:[#allocation7 + $0xa8] sm:$0xff]
    %v110 = vld [vmem:[#allocation7 + $0xb0] sm:$0xff]
    %v111 = vld [vmem:[#allocation7 + $0xb8] sm:$0xff]
    %v112 = vld [vmem:[#allocation7 + $0xc0] sm:$0xff]
    %v113 = vld [vmem:[#allocation7 + $0xc8] sm:$0xff]
    %v114 = vld [vmem:[#allocation7 + $0xd0] sm:$0xff]
    %v115 = vld [vmem:[#allocation7 + $0xd8] sm:$0xff]
    %v116 = vld [vmem:[#allocation7 + $0xe0] sm:$0xff]
    %v117 = vld [vmem:[#allocation7 + $0xe8] sm:$0xff]
    %v118 = vld [vmem:[#allocation7 + $0xf0] sm:$0xff]
    %v119 = vld [vmem:[#allocation7 + $0xf8] sm:$0xff]
    %v128 = vunpack.c.l.b16 %v80
    %v129 = vunpack.c.l.b16 %v81
    %v130 = vunpack.c.l.b16 %v82
    %v131 = vunpack.c.l.b16 %v83
    %v132 = vunpack.c.l.b16 %v84
    %v133 = vunpack.c.l.b16 %v85
    %v134 = vunpack.c.l.b16 %v86
    %v135 = vunpack.c.l.b16 %v87
    %v136 = vpack.c.b16 %v129, %v128
    %v137 = vpack.c.b16 %v131, %v130
    %v138 = vpack.c.b16 %v133, %v132
    %v139 = vpack.c.b16 %v135, %v134
    %v176 = vunpack.c.l.b16 %v88
    %v177 = vunpack.c.h.b16 %v88
    %v178 = vunpack.c.l.b16 %v89
    %v179 = vunpack.c.h.b16 %v89
    %v180 = vunpack.c.l.b16 %v90
    %v181 = vunpack.c.h.b16 %v90
    %v182 = vunpack.c.l.b16 %v91
    %v183 = vunpack.c.h.b16 %v91
    %v184 = vunpack.c.l.b16 %v92
    %v185 = vunpack.c.h.b16 %v92
    %v186 = vunpack.c.l.b16 %v93
    %v187 = vunpack.c.h.b16 %v93
    %v188 = vunpack.c.l.b16 %v94
    %v189 = vunpack.c.h.b16 %v94
    %v190 = vunpack.c.l.b16 %v95
    %v191 = vunpack.c.h.b16 %v95
    %v192 = vunpack.c.l.b16 %v96
    %v193 = vunpack.c.h.b16 %v96
    %v194 = vunpack.c.l.b16 %v97
    %v195 = vunpack.c.h.b16 %v97
    %v196 = vunpack.c.l.b16 %v98
    %v197 = vunpack.c.h.b16 %v98
    %v198 = vunpack.c.l.b16 %v99
    %v199 = vunpack.c.h.b16 %v99
    %v200 = vunpack.c.l.b16 %v100
    %v201 = vunpack.c.h.b16 %v100
    %v202 = vunpack.c.l.b16 %v101
    %v203 = vunpack.c.h.b16 %v101
    %v204 = vunpack.c.l.b16 %v102
    %v205 = vunpack.c.h.b16 %v102
    %v206 = vunpack.c.l.b16 %v103
    %v207 = vunpack.c.h.b16 %v103
    %v208 = vunpack.c.l.b16 %v104
    %v209 = vunpack.c.h.b16 %v104
    %v210 = vunpack.c.l.b16 %v105
    %v211 = vunpack.c.h.b16 %v105
    %v212 = vunpack.c.l.b16 %v106
    %v213 = vunpack.c.h.b16 %v106
    %v214 = vunpack.c.l.b16 %v107
    %v215 = vunpack.c.h.b16 %v107
    %v216 = vunpack.c.l.b16 %v108
    %v217 = vunpack.c.h.b16 %v108
    %v218 = vunpack.c.l.b16 %v109
    %v219 = vunpack.c.h.b16 %v109
    %v220 = vunpack.c.l.b16 %v110
    %v221 = vunpack.c.h.b16 %v110
    %v222 = vunpack.c.l.b16 %v111
    %v223 = vunpack.c.h.b16 %v111
    %v224 = vunpack.c.l.b16 %v112
    %v225 = vunpack.c.h.b16 %v112
    %v226 = vunpack.c.l.b16 %v113
    %v227 = vunpack.c.h.b16 %v113
    %v228 = vunpack.c.l.b16 %v114
    %v229 = vunpack.c.h.b16 %v114
    %v230 = vunpack.c.l.b16 %v115
    %v231 = vunpack.c.h.b16 %v115
    %v232 = vunpack.c.l.b16 %v116
    %v233 = vunpack.c.h.b16 %v116
    %v234 = vunpack.c.l.b16 %v117
    %v235 = vunpack.c.h.b16 %v117
    %v236 = vunpack.c.l.b16 %v118
    %v237 = vunpack.c.h.b16 %v118
    %v238 = vunpack.c.l.b16 %v119
    %v239 = vunpack.c.h.b16 %v119
    %v240 = vpack.c.b16 %v180, %v176
    %v241 = vpack.c.b16 %v181, %v177
    %v242 = vpack.c.b16 %v182, %v178
    %v243 = vpack.c.b16 %v183, %v179
    %v244 = vpack.c.b16 %v188, %v184
    %v245 = vpack.c.b16 %v189, %v185
    %v246 = vpack.c.b16 %v190, %v186
    %v247 = vpack.c.b16 %v191, %v187
    %v248 = vpack.c.b16 %v196, %v192
    %v249 = vpack.c.b16 %v197, %v193
    %v250 = vpack.c.b16 %v198, %v194
    %v251 = vpack.c.b16 %v199, %v195
    %v252 = vpack.c.b16 %v204, %v200
    %v253 = vpack.c.b16 %v205, %v201
    %v254 = vpack.c.b16 %v206, %v202
    %v255 = vpack.c.b16 %v207, %v203
    %v256 = vpack.c.b16 %v212, %v208
    %v257 = vpack.c.b16 %v213, %v209
    %v258 = vpack.c.b16 %v214, %v210
    %v259 = vpack.c.b16 %v215, %v211
    %v260 = vpack.c.b16 %v220, %v216
    %v261 = vpack.c.b16 %v221, %v217
    %v262 = vpack.c.b16 %v222, %v218
    %v263 = vpack.c.b16 %v223, %v219
    %v264 = vpack.c.b16 %v228, %v224
    %v265 = vpack.c.b16 %v229, %v225
    %v266 = vpack.c.b16 %v230, %v226
    %v267 = vpack.c.b16 %v231, %v227
    %v268 = vpack.c.b16 %v236, %v232
    %v269 = vpack.c.b16 %v237, %v233
    %v270 = vpack.c.b16 %v238, %v234
    %v271 = vpack.c.b16 %v239, %v235
    %304 = vmatprep.subr.bf16.mxu0 %v269
    %305 = vmatpush1.bf16.msra.mxu0 %v268
    %306 = vmatprep.subr.bf16.mxu0 %v265
    %307 = vmatpush1.bf16.msra.mxu0 %v264
    %308 = vmatprep.subr.bf16.mxu0 %v261
    %309 = vmatpush1.bf16.msra.mxu0 %v260
    %310 = vmatprep.subr.bf16.mxu0 %v257
    %311 = vmatpush1.bf16.msra.mxu0 %v256
    %312 = vmatprep.subr.bf16.mxu0 %v253
    %313 = vmatpush1.bf16.msra.mxu0 %v252
    %314 = vmatprep.subr.bf16.mxu0 %v249
    %315 = vmatpush1.bf16.msra.mxu0 %v248
    %316 = vmatprep.subr.bf16.mxu0 %v245
    %317 = vmatpush1.bf16.msra.mxu0 %v244
    %318 = vmatprep.subr.bf16.mxu0 %v241
    %319 = vmatpush1.bf16.msra.mxu0 %v240
    %320 = vmatprep.subr.bf16.mxu0 0
    %321 = vmatpush2.bf16.msra.mxu0 0
    %322 = vmatprep.subr.bf16.mxu0 0
    %323 = vmatpush2.bf16.msra.mxu0 0
    %324 = vmatprep.subr.bf16.mxu0 0
    %325 = vmatpush2.bf16.msra.mxu0 0
    %326 = vmatprep.subr.bf16.mxu0 0
    %327 = vmatpush2.bf16.msra.mxu0 0
    %328 = vmatprep.subr.bf16.mxu0 0
    %329 = vmatpush2.bf16.msra.mxu0 0
    %330 = vmatprep.subr.bf16.mxu0 0
    %331 = vmatpush2.bf16.msra.mxu0 0
    %332 = vmatprep.subr.bf16.mxu0 0
    %333 = vmatpush2.bf16.msra.mxu0 0
    %334 = vmatprep.subr.bf16.mxu0 0
    %335 = vmatpush2.bf16.msra.mxu0 0
    %336 = vmatprep.mubr.bf16.mxu0 0
    %337 = vmatmul.mubr.bf16.gmra.mxu0 %v136
    %v338 = vpop.f32.mrf.mxu0
    %v339 = vadd.f32 0.0, %v338
    %v340 = vpop.f32.mrf.mxu0
    %v341 = vadd.f32 0.0, %v340
    %v342 = vpop.f32.mrf.mxu0
    %v343 = vadd.f32 0.0, %v342
    %v344 = vpop.f32.mrf.mxu0
    %v345 = vadd.f32 0.0, %v344
    %346 = vmatprep.mubr.bf16.mxu0 0
    %347 = vmatmul.mubr.bf16.gmra.mxu0 %v137
    %v348 = vpop.f32.mrf.mxu0
    %v349 = vadd.f32 0.0, %v348
    %v350 = vpop.f32.mrf.mxu0
    %v351 = vadd.f32 0.0, %v350
    %v352 = vpop.f32.mrf.mxu0
    %v353 = vadd.f32 0.0, %v352
    %v354 = vpop.f32.mrf.mxu0
    %v355 = vadd.f32 0.0, %v354
    %356 = vmatprep.mubr.bf16.mxu0 0
    %357 = vmatmul.mubr.bf16.gmra.mxu0 %v138
    %v358 = vpop.f32.mrf.mxu0
    %v359 = vadd.f32 0.0, %v358
    %v360 = vpop.f32.mrf.mxu0
    %v361 = vadd.f32 0.0, %v360
    %v362 = vpop.f32.mrf.mxu0
    %v363 = vadd.f32 0.0, %v362
    %v364 = vpop.f32.mrf.mxu0
    %v365 = vadd.f32 0.0, %v364
    %366 = vmatprep.mubr.bf16.mxu0 0
    %367 = vmatmul.mubr.bf16.gmra.mxu0 %v139
    %v368 = vpop.f32.mrf.mxu0
    %v369 = vadd.f32 0.0, %v368
    %v370 = vpop.f32.mrf.mxu0
    %v371 = vadd.f32 0.0, %v370
    %v372 = vpop.f32.mrf.mxu0
    %v373 = vadd.f32 0.0, %v372
    %v374 = vpop.f32.mrf.mxu0
    %v375 = vadd.f32 0.0, %v374
    %376 = vdwg.mxu0
    %377 = vmatprep.subr.bf16.mxu0 %v271
    %378 = vmatpush1.bf16.msra.mxu0 %v270
    %379 = vmatprep.subr.bf16.mxu0 %v267
    %380 = vmatpush1.bf16.msra.mxu0 %v266
    %381 = vmatprep.subr.bf16.mxu0 %v263
    %382 = vmatpush1.bf16.msra.mxu0 %v262
    %383 = vmatprep.subr.bf16.mxu0 %v259
    %384 = vmatpush1.bf16.msra.mxu0 %v258
    %385 = vmatprep.subr.bf16.mxu0 %v255
    %386 = vmatpush1.bf16.msra.mxu0 %v254
    %387 = vmatprep.subr.bf16.mxu0 %v251
    %388 = vmatpush1.bf16.msra.mxu0 %v250
    %389 = vmatprep.subr.bf16.mxu0 %v247
    %390 = vmatpush1.bf16.msra.mxu0 %v246
    %391 = vmatprep.subr.bf16.mxu0 %v243
    %392 = vmatpush1.bf16.msra.mxu0 %v242
    %393 = vmatprep.subr.bf16.mxu0 0
    %394 = vmatpush2.bf16.msra.mxu0 0
    %395 = vmatprep.subr.bf16.mxu0 0
    %396 = vmatpush2.bf16.msra.mxu0 0
    %397 = vmatprep.subr.bf16.mxu0 0
    %398 = vmatpush2.bf16.msra.mxu0 0
    %399 = vmatprep.subr.bf16.mxu0 0
    %400 = vmatpush2.bf16.msra.mxu0 0
    %401 = vmatprep.subr.bf16.mxu0 0
    %402 = vmatpush2.bf16.msra.mxu0 0
    %403 = vmatprep.subr.bf16.mxu0 0
    %404 = vmatpush2.bf16.msra.mxu0 0
    %405 = vmatprep.subr.bf16.mxu0 0
    %406 = vmatpush2.bf16.msra.mxu0 0
    %407 = vmatprep.subr.bf16.mxu0 0
    %408 = vmatpush2.bf16.msra.mxu0 0
    %409 = vmatprep.mubr.bf16.mxu0 0
    %410 = vmatmul.mubr.bf16.gmra.mxu0 %v136
    %v411 = vpop.f32.mrf.mxu0
    %v412 = vadd.f32 0.0, %v411
    %v413 = vpop.f32.mrf.mxu0
    %v414 = vadd.f32 0.0, %v413
    %v415 = vpop.f32.mrf.mxu0
    %v416 = vadd.f32 0.0, %v415
    %v417 = vpop.f32.mrf.mxu0
    %v418 = vadd.f32 0.0, %v417
    %419 = vmatprep.mubr.bf16.mxu0 0
    %420 = vmatmul.mubr.bf16.gmra.mxu0 %v137
    %v421 = vpop.f32.mrf.mxu0
    %v422 = vadd.f32 0.0, %v421
    %v423 = vpop.f32.mrf.mxu0
    %v424 = vadd.f32 0.0, %v423
    %v425 = vpop.f32.mrf.mxu0
    %v426 = vadd.f32 0.0, %v425
    %v427 = vpop.f32.mrf.mxu0
    %v428 = vadd.f32 0.0, %v427
    %429 = vmatprep.mubr.bf16.mxu0 0
    %430 = vmatmul.mubr.bf16.gmra.mxu0 %v138
    %v431 = vpop.f32.mrf.mxu0
    %v432 = vadd.f32 0.0, %v431
    %v433 = vpop.f32.mrf.mxu0
    %v434 = vadd.f32 0.0, %v433
    %v435 = vpop.f32.mrf.mxu0
    %v436 = vadd.f32 0.0, %v435
    %v437 = vpop.f32.mrf.mxu0
    %v438 = vadd.f32 0.0, %v437
    %439 = vmatprep.mubr.bf16.mxu0 0
    %440 = vmatmul.mubr.bf16.gmra.mxu0 %v139
    %v441 = vpop.f32.mrf.mxu0
    %v442 = vadd.f32 0.0, %v441
    %v443 = vpop.f32.mrf.mxu0
    %v444 = vadd.f32 0.0, %v443
    %v445 = vpop.f32.mrf.mxu0
    %v446 = vadd.f32 0.0, %v445
    %v447 = vpop.f32.mrf.mxu0
    %v448 = vadd.f32 0.0, %v447
    %449 = vdwg.mxu0
    %v450 = vld [vmem:[%s3] sm:$0x1]
    %v452 = vlaneseq
    %v453 = vshrl.u32 %v452, 7
    %v454 = vsub.s32 0, %v453
    %v455 = vrot.slane %v450, %v454
    %v457 = vadd.f32 %v339, %v455
    %v458 = vadd.f32 %v343, %v455
    %v459 = vadd.f32 %v349, %v455
    %v460 = vadd.f32 %v353, %v455
    %v461 = vadd.f32 %v359, %v455
    %v462 = vadd.f32 %v363, %v455
    %v463 = vadd.f32 %v369, %v455
    %v464 = vadd.f32 %v373, %v455
    %v465 = vpack.c.bf16 %v345, %v341
    %v466 = vpack.c.bf16 %v355, %v351
    %v467 = vpack.c.bf16 %v365, %v361
    %v468 = vpack.c.bf16 %v375, %v371
    %v469 = vld [vmem:[#allocation2] sm:$0xf]
    %v470 = vld [vmem:[#allocation2 + $0x4] sm:$0xf]
    %v471 = vld [vmem:[#allocation2 + $0x8] sm:$0xf]
    %v472 = vld [vmem:[#allocation2 + $0xc] sm:$0xf]
    %v473 = vld [vmem:[#allocation2 + $0x10] sm:$0xf]
    %v474 = vld [vmem:[#allocation2 + $0x14] sm:$0xf]
    %v475 = vld [vmem:[#allocation2 + $0x18] sm:$0xf]
    %v476 = vld [vmem:[#allocation2 + $0x1c] sm:$0xf]
    %v485 = vunpack.c.l.b16 %v469
    %v486 = vunpack.c.l.b16 %v470
    %v487 = vunpack.c.l.b16 %v471
    %v488 = vunpack.c.l.b16 %v472
    %v489 = vunpack.c.l.b16 %v473
    %v490 = vunpack.c.l.b16 %v474
    %v491 = vunpack.c.l.b16 %v475
    %v492 = vunpack.c.l.b16 %v476
    %v493 = vpack.c.b16 %v486, %v485
    %v494 = vpack.c.b16 %v488, %v487
    %v495 = vpack.c.b16 %v490, %v489
    %v496 = vpack.c.b16 %v492, %v491
    %vm497 = vcmask 523264
    %v499 = vsel %vm497, %v493, 0
    %v502 = vsel %vm497, %v494, 0
    %v505 = vsel %vm497, %v495, 0
    %v508 = vsel %vm497, %v496, 0
    %510 = vmatprep.subr.bf16.mxu0 0
    %511 = vmatpush1.bf16.msra.mxu0 0
    %512 = vmatprep.subr.bf16.mxu0 0
    %513 = vmatpush1.bf16.msra.mxu0 0
    %514 = vmatprep.subr.bf16.mxu0 0
    %515 = vmatpush1.bf16.msra.mxu0 0
    %516 = vmatprep.subr.bf16.mxu0 0
    %517 = vmatpush1.bf16.msra.mxu0 0
    %518 = vmatprep.subr.bf16.mxu0 0
    %519 = vmatpush1.bf16.msra.mxu0 %v468
    %520 = vmatprep.subr.bf16.mxu0 0
    %521 = vmatpush1.bf16.msra.mxu0 %v467
    %522 = vmatprep.subr.bf16.mxu0 0
    %523 = vmatpush1.bf16.msra.mxu0 %v466
    %524 = vmatprep.subr.bf16.mxu0 0
    %525 = vmatpush1.bf16.msra.mxu0 %v465
    %526 = vmatprep.subr.bf16.mxu0 0
    %527 = vmatpush2.bf16.msra.mxu0 0
    %528 = vmatprep.subr.bf16.mxu0 0
    %529 = vmatpush2.bf16.msra.mxu0 0
    %530 = vmatprep.subr.bf16.mxu0 0
    %531 = vmatpush2.bf16.msra.mxu0 0
    %532 = vmatprep.subr.bf16.mxu0 0
    %533 = vmatpush2.bf16.msra.mxu0 0
    %534 = vmatprep.subr.bf16.mxu0 0
    %535 = vmatpush2.bf16.msra.mxu0 0
    %536 = vmatprep.subr.bf16.mxu0 0
    %537 = vmatpush2.bf16.msra.mxu0 0
    %538 = vmatprep.subr.bf16.mxu0 0
    %539 = vmatpush2.bf16.msra.mxu0 0
    %540 = vmatprep.subr.bf16.mxu0 0
    %541 = vmatpush2.bf16.msra.mxu0 0
    %542 = vmatprep.mubr.bf16.mxu0 0
    %543 = vmatmul.mubr.bf16.gmra.mxu0 %v499
    %v544 = vpop.f32.mrf.mxu0
    %v545 = vadd.f32 0.0, %v544
    %v546 = vpop.f32.mrf.mxu0
    %v547 = vpop.f32.mrf.mxu0
    %v548 = vadd.f32 0.0, %v547
    %v549 = vpop.f32.mrf.mxu0
    %550 = vmatprep.mubr.bf16.mxu0 0
    %551 = vmatmul.mubr.bf16.gmra.mxu0 %v502
    %v552 = vpop.f32.mrf.mxu0
    %v553 = vadd.f32 0.0, %v552
    %v554 = vpop.f32.mrf.mxu0
    %v555 = vpop.f32.mrf.mxu0
    %v556 = vadd.f32 0.0, %v555
    %v557 = vpop.f32.mrf.mxu0
    %558 = vmatprep.mubr.bf16.mxu0 0
    %559 = vmatmul.mubr.bf16.gmra.mxu0 %v505
    %v560 = vpop.f32.mrf.mxu0
    %v561 = vadd.f32 0.0, %v560
    %v562 = vpop.f32.mrf.mxu0
    %v563 = vpop.f32.mrf.mxu0
    %v564 = vadd.f32 0.0, %v563
    %v565 = vpop.f32.mrf.mxu0
    %566 = vmatprep.mubr.bf16.mxu0 0
    %567 = vmatmul.mubr.bf16.gmra.mxu0 %v508
    %v568 = vpop.f32.mrf.mxu0
    %v569 = vadd.f32 0.0, %v568
    %v570 = vpop.f32.mrf.mxu0
    %v571 = vpop.f32.mrf.mxu0
    %v572 = vadd.f32 0.0, %v571
    %v573 = vpop.f32.mrf.mxu0
    %574 = vdwg.mxu0
    %v575 = vadd.f32 %v457, %v545
    %v576 = vadd.f32 %v458, %v548
    %v577 = vadd.f32 %v459, %v553
    %v578 = vadd.f32 %v460, %v556
    %v579 = vadd.f32 %v461, %v561
    %v580 = vadd.f32 %v462, %v564
    %v581 = vadd.f32 %v463, %v569
    %v582 = vadd.f32 %v464, %v572
    %v583 = vpack.c.bf16 %v416, %v412
    %v584 = vpack.c.bf16 %v426, %v422
    %v585 = vpack.c.bf16 %v436, %v432
    %v586 = vpack.c.bf16 %v446, %v442
    %s587 = scalar_lea.vmem [#allocation2], 32
    %v588 = vld [vmem:[%s587] sm:$0xf]
    %v589 = vld [vmem:[%s587 + $0x4] sm:$0xf]
    %v590 = vld [vmem:[%s587 + $0x8] sm:$0xf]
    %v591 = vld [vmem:[%s587 + $0xc] sm:$0xf]
    %v592 = vld [vmem:[%s587 + $0x10] sm:$0xf]
    %v593 = vld [vmem:[%s587 + $0x14] sm:$0xf]
    %v594 = vld [vmem:[%s587 + $0x18] sm:$0xf]
    %v595 = vld [vmem:[%s587 + $0x1c] sm:$0xf]
    %v604 = vunpack.c.l.b16 %v588
    %v605 = vunpack.c.l.b16 %v589
    %v606 = vunpack.c.l.b16 %v590
    %v607 = vunpack.c.l.b16 %v591
    %v608 = vunpack.c.l.b16 %v592
    %v609 = vunpack.c.l.b16 %v593
    %v610 = vunpack.c.l.b16 %v594
    %v611 = vunpack.c.l.b16 %v595
    %v612 = vpack.c.b16 %v605, %v604
    %v613 = vpack.c.b16 %v607, %v606
    %v614 = vpack.c.b16 %v609, %v608
    %v615 = vpack.c.b16 %v611, %v610
    %v617 = vsel %vm497, %v612, 0
    %v620 = vsel %vm497, %v613, 0
    %v623 = vsel %vm497, %v614, 0
    %v626 = vsel %vm497, %v615, 0
    %628 = vmatprep.subr.bf16.mxu0 0
    %629 = vmatpush1.bf16.msra.mxu0 0
    %630 = vmatprep.subr.bf16.mxu0 0
    %631 = vmatpush1.bf16.msra.mxu0 0
    %632 = vmatprep.subr.bf16.mxu0 0
    %633 = vmatpush1.bf16.msra.mxu0 0
    %634 = vmatprep.subr.bf16.mxu0 0
    %635 = vmatpush1.bf16.msra.mxu0 0
    %636 = vmatprep.subr.bf16.mxu0 0
    %637 = vmatpush1.bf16.msra.mxu0 %v586
    %638 = vmatprep.subr.bf16.mxu0 0
    %639 = vmatpush1.bf16.msra.mxu0 %v585
    %640 = vmatprep.subr.bf16.mxu0 0
    %641 = vmatpush1.bf16.msra.mxu0 %v584
    %642 = vmatprep.subr.bf16.mxu0 0
    %643 = vmatpush1.bf16.msra.mxu0 %v583
    %644 = vmatprep.subr.bf16.mxu0 0
    %645 = vmatpush2.bf16.msra.mxu0 0
    %646 = vmatprep.subr.bf16.mxu0 0
    %647 = vmatpush2.bf16.msra.mxu0 0
    %648 = vmatprep.subr.bf16.mxu0 0
    %649 = vmatpush2.bf16.msra.mxu0 0
    %650 = vmatprep.subr.bf16.mxu0 0
    %651 = vmatpush2.bf16.msra.mxu0 0
    %652 = vmatprep.subr.bf16.mxu0 0
    %653 = vmatpush2.bf16.msra.mxu0 0
    %654 = vmatprep.subr.bf16.mxu0 0
    %655 = vmatpush2.bf16.msra.mxu0 0
    %656 = vmatprep.subr.bf16.mxu0 0
    %657 = vmatpush2.bf16.msra.mxu0 0
    %658 = vmatprep.subr.bf16.mxu0 0
    %659 = vmatpush2.bf16.msra.mxu0 0
    %660 = vmatprep.mubr.bf16.mxu0 0
    %661 = vmatmul.mubr.bf16.gmra.mxu0 %v617
    %v662 = vpop.f32.mrf.mxu0
    %v663 = vadd.f32 0.0, %v662
    %v664 = vpop.f32.mrf.mxu0
    %v665 = vpop.f32.mrf.mxu0
    %v666 = vadd.f32 0.0, %v665
    %v667 = vpop.f32.mrf.mxu0
    %668 = vmatprep.mubr.bf16.mxu0 0
    %669 = vmatmul.mubr.bf16.gmra.mxu0 %v620
    %v670 = vpop.f32.mrf.mxu0
    %v671 = vadd.f32 0.0, %v670
    %v672 = vpop.f32.mrf.mxu0
    %v673 = vpop.f32.mrf.mxu0
    %v674 = vadd.f32 0.0, %v673
    %v675 = vpop.f32.mrf.mxu0
    %676 = vmatprep.mubr.bf16.mxu0 0
    %677 = vmatmul.mubr.bf16.gmra.mxu0 %v623
    %v678 = vpop.f32.mrf.mxu0
    %v679 = vadd.f32 0.0, %v678
    %v680 = vpop.f32.mrf.mxu0
    %v681 = vpop.f32.mrf.mxu0
    %v682 = vadd.f32 0.0, %v681
    %v683 = vpop.f32.mrf.mxu0
    %684 = vmatprep.mubr.bf16.mxu0 0
    %685 = vmatmul.mubr.bf16.gmra.mxu0 %v626
    %v686 = vpop.f32.mrf.mxu0
    %v687 = vadd.f32 0.0, %v686
    %v688 = vpop.f32.mrf.mxu0
    %v689 = vpop.f32.mrf.mxu0
    %v690 = vadd.f32 0.0, %v689
    %v691 = vpop.f32.mrf.mxu0
    %692 = vdwg.mxu0
    %v693 = vadd.f32 %v575, %v663
    %v694 = vadd.f32 %v576, %v666
    %v695 = vadd.f32 %v577, %v671
    %v696 = vadd.f32 %v578, %v674
    %v697 = vadd.f32 %v579, %v679
    %v698 = vadd.f32 %v580, %v682
    %v699 = vadd.f32 %v581, %v687
    %v700 = vadd.f32 %v582, %v690
    %v701 = vpack.c.bf16 %v418, %v414
    %v702 = vpack.c.bf16 %v428, %v424
    %v703 = vpack.c.bf16 %v438, %v434
    %v704 = vpack.c.bf16 %v448, %v444
    %s705 = scalar_lea.vmem [#allocation2], 64
    %v706 = vld [vmem:[%s705] sm:$0xf]
    %v707 = vld [vmem:[%s705 + $0x4] sm:$0xf]
    %v708 = vld [vmem:[%s705 + $0x8] sm:$0xf]
    %v709 = vld [vmem:[%s705 + $0xc] sm:$0xf]
    %v710 = vld [vmem:[%s705 + $0x10] sm:$0xf]
    %v711 = vld [vmem:[%s705 + $0x14] sm:$0xf]
    %v712 = vld [vmem:[%s705 + $0x18] sm:$0xf]
    %v713 = vld [vmem:[%s705 + $0x1c] sm:$0xf]
    %v722 = vunpack.c.l.b16 %v706
    %v723 = vunpack.c.l.b16 %v707
    %v724 = vunpack.c.l.b16 %v708
    %v725 = vunpack.c.l.b16 %v709
    %v726 = vunpack.c.l.b16 %v710
    %v727 = vunpack.c.l.b16 %v711
    %v728 = vunpack.c.l.b16 %v712
    %v729 = vunpack.c.l.b16 %v713
    %v730 = vpack.c.b16 %v723, %v722
    %v731 = vpack.c.b16 %v725, %v724
    %v732 = vpack.c.b16 %v727, %v726
    %v733 = vpack.c.b16 %v729, %v728
    %v735 = vsel %vm497, %v730, 0
    %v738 = vsel %vm497, %v731, 0
    %v741 = vsel %vm497, %v732, 0
    %v744 = vsel %vm497, %v733, 0
    %746 = vmatprep.subr.bf16.mxu0 0
    %747 = vmatpush1.bf16.msra.mxu0 0
    %748 = vmatprep.subr.bf16.mxu0 0
    %749 = vmatpush1.bf16.msra.mxu0 0
    %750 = vmatprep.subr.bf16.mxu0 0
    %751 = vmatpush1.bf16.msra.mxu0 0
    %752 = vmatprep.subr.bf16.mxu0 0
    %753 = vmatpush1.bf16.msra.mxu0 0
    %754 = vmatprep.subr.bf16.mxu0 0
    %755 = vmatpush1.bf16.msra.mxu0 %v704
    %756 = vmatprep.subr.bf16.mxu0 0
    %757 = vmatpush1.bf16.msra.mxu0 %v703
    %758 = vmatprep.subr.bf16.mxu0 0
    %759 = vmatpush1.bf16.msra.mxu0 %v702
    %760 = vmatprep.subr.bf16.mxu0 0
    %761 = vmatpush1.bf16.msra.mxu0 %v701
    %762 = vmatprep.subr.bf16.mxu0 0
    %763 = vmatpush2.bf16.msra.mxu0 0
    %764 = vmatprep.subr.bf16.mxu0 0
    %765 = vmatpush2.bf16.msra.mxu0 0
    %766 = vmatprep.subr.bf16.mxu0 0
    %767 = vmatpush2.bf16.msra.mxu0 0
    %768 = vmatprep.subr.bf16.mxu0 0
    %769 = vmatpush2.bf16.msra.mxu0 0
    %770 = vmatprep.subr.bf16.mxu0 0
    %771 = vmatpush2.bf16.msra.mxu0 0
    %772 = vmatprep.subr.bf16.mxu0 0
    %773 = vmatpush2.bf16.msra.mxu0 0
    %774 = vmatprep.subr.bf16.mxu0 0
    %775 = vmatpush2.bf16.msra.mxu0 0
    %776 = vmatprep.subr.bf16.mxu0 0
    %777 = vmatpush2.bf16.msra.mxu0 0
    %778 = vmatprep.mubr.bf16.mxu0 0
    %779 = vmatmul.mubr.bf16.gmra.mxu0 %v735
    %v780 = vpop.f32.mrf.mxu0
    %v781 = vadd.f32 0.0, %v780
    %v782 = vpop.f32.mrf.mxu0
    %v783 = vpop.f32.mrf.mxu0
    %v784 = vadd.f32 0.0, %v783
    %v785 = vpop.f32.mrf.mxu0
    %786 = vmatprep.mubr.bf16.mxu0 0
    %787 = vmatmul.mubr.bf16.gmra.mxu0 %v738
    %v788 = vpop.f32.mrf.mxu0
    %v789 = vadd.f32 0.0, %v788
    %v790 = vpop.f32.mrf.mxu0
    %v791 = vpop.f32.mrf.mxu0
    %v792 = vadd.f32 0.0, %v791
    %v793 = vpop.f32.mrf.mxu0
    %794 = vmatprep.mubr.bf16.mxu0 0
    %795 = vmatmul.mubr.bf16.gmra.mxu0 %v741
    %v796 = vpop.f32.mrf.mxu0
    %v797 = vadd.f32 0.0, %v796
    %v798 = vpop.f32.mrf.mxu0
    %v799 = vpop.f32.mrf.mxu0
    %v800 = vadd.f32 0.0, %v799
    %v801 = vpop.f32.mrf.mxu0
    %802 = vmatprep.mubr.bf16.mxu0 0
    %803 = vmatmul.mubr.bf16.gmra.mxu0 %v744
    %v804 = vpop.f32.mrf.mxu0
    %v805 = vadd.f32 0.0, %v804
    %v806 = vpop.f32.mrf.mxu0
    %v807 = vpop.f32.mrf.mxu0
    %v808 = vadd.f32 0.0, %v807
    %v809 = vpop.f32.mrf.mxu0
    %810 = vdwg.mxu0
    %v811 = vadd.f32 %v693, %v781
    %v812 = vadd.f32 %v694, %v784
    %v813 = vadd.f32 %v695, %v789
    %v814 = vadd.f32 %v696, %v792
    %v815 = vadd.f32 %v697, %v797
    %v816 = vadd.f32 %v698, %v800
    %v817 = vadd.f32 %v699, %v805
    %v818 = vadd.f32 %v700, %v808
    %v819 = vmax.f32 %v811, 0.0
    %v820 = vmax.f32 %v812, 0.0
    %v821 = vmax.f32 %v813, 0.0
    %v822 = vmax.f32 %v814, 0.0
    %v823 = vmax.f32 %v815, 0.0
    %v824 = vmax.f32 %v816, 0.0
    %v825 = vmax.f32 %v817, 0.0
    %v826 = vmax.f32 %v818, 0.0
    %v827 = vpack.c.bf16 %v820, %v819
    %v828 = vpack.c.bf16 %v822, %v821
    %v829 = vpack.c.bf16 %v824, %v823
    %v830 = vpack.c.bf16 %v826, %v825
    %v831 = vld [vmem:[#allocation8] sm:$0xff]
    %v832 = vld [vmem:[#allocation8 + $0x8] sm:$0xff]
    %v833 = vld [vmem:[#allocation8 + $0x10] sm:$0xff]
    %v834 = vld [vmem:[#allocation8 + $0x18] sm:$0xff]
    %v835 = vld [vmem:[#allocation8 + $0x20] sm:$0xff]
    %v836 = vld [vmem:[#allocation8 + $0x28] sm:$0xff]
    %v837 = vld [vmem:[#allocation8 + $0x30] sm:$0xff]
    %v838 = vld [vmem:[#allocation8 + $0x38] sm:$0xff]
    %v839 = vld [vmem:[#allocation8 + $0x40] sm:$0xff]
    %v840 = vld [vmem:[#allocation8 + $0x48] sm:$0xff]
    %v841 = vld [vmem:[#allocation8 + $0x50] sm:$0xff]
    %v842 = vld [vmem:[#allocation8 + $0x58] sm:$0xff]
    %v843 = vld [vmem:[#allocation8 + $0x60] sm:$0xff]
    %v844 = vld [vmem:[#allocation8 + $0x68] sm:$0xff]
    %v845 = vld [vmem:[#allocation8 + $0x70] sm:$0xff]
    %v846 = vld [vmem:[#allocation8 + $0x78] sm:$0xff]
    %v847 = vld [vmem:[#allocation8 + $0x80] sm:$0xff]
    %v848 = vld [vmem:[#allocation8 + $0x88] sm:$0xff]
    %v849 = vld [vmem:[#allocation8 + $0x90] sm:$0xff]
    %v850 = vld [vmem:[#allocation8 + $0x98] sm:$0xff]
    %v851 = vld [vmem:[#allocation8 + $0xa0] sm:$0xff]
    %v852 = vld [vmem:[#allocation8 + $0xa8] sm:$0xff]
    %v853 = vld [vmem:[#allocation8 + $0xb0] sm:$0xff]
    %v854 = vld [vmem:[#allocation8 + $0xb8] sm:$0xff]
    %v855 = vld [vmem:[#allocation8 + $0xc0] sm:$0xff]
    %v856 = vld [vmem:[#allocation8 + $0xc8] sm:$0xff]
    %v857 = vld [vmem:[#allocation8 + $0xd0] sm:$0xff]
    %v858 = vld [vmem:[#allocation8 + $0xd8] sm:$0xff]
    %v859 = vld [vmem:[#allocation8 + $0xe0] sm:$0xff]
    %v860 = vld [vmem:[#allocation8 + $0xe8] sm:$0xff]
    %v861 = vld [vmem:[#allocation8 + $0xf0] sm:$0xff]
    %v862 = vld [vmem:[#allocation8 + $0xf8] sm:$0xff]
    %v895 = vunpack.c.l.b16 %v831
    %v896 = vunpack.c.h.b16 %v831
    %v897 = vunpack.c.l.b16 %v832
    %v898 = vunpack.c.h.b16 %v832
    %v899 = vunpack.c.l.b16 %v833
    %v900 = vunpack.c.h.b16 %v833
    %v901 = vunpack.c.l.b16 %v834
    %v902 = vunpack.c.h.b16 %v834
    %v903 = vunpack.c.l.b16 %v835
    %v904 = vunpack.c.h.b16 %v835
    %v905 = vunpack.c.l.b16 %v836
    %v906 = vunpack.c.h.b16 %v836
    %v907 = vunpack.c.l.b16 %v837
    %v908 = vunpack.c.h.b16 %v837
    %v909 = vunpack.c.l.b16 %v838
    %v910 = vunpack.c.h.b16 %v838
    %v911 = vunpack.c.l.b16 %v839
    %v912 = vunpack.c.h.b16 %v839
    %v913 = vunpack.c.l.b16 %v840
    %v914 = vunpack.c.h.b16 %v840
    %v915 = vunpack.c.l.b16 %v841
    %v916 = vunpack.c.h.b16 %v841
    %v917 = vunpack.c.l.b16 %v842
    %v918 = vunpack.c.h.b16 %v842
    %v919 = vunpack.c.l.b16 %v843
    %v920 = vunpack.c.h.b16 %v843
    %v921 = vunpack.c.l.b16 %v844
    %v922 = vunpack.c.h.b16 %v844
    %v923 = vunpack.c.l.b16 %v845
    %v924 = vunpack.c.h.b16 %v845
    %v925 = vunpack.c.l.b16 %v846
    %v926 = vunpack.c.h.b16 %v846
    %v927 = vunpack.c.l.b16 %v847
    %v928 = vunpack.c.h.b16 %v847
    %v929 = vunpack.c.l.b16 %v848
    %v930 = vunpack.c.h.b16 %v848
    %v931 = vunpack.c.l.b16 %v849
    %v932 = vunpack.c.h.b16 %v849
    %v933 = vunpack.c.l.b16 %v850
    %v934 = vunpack.c.h.b16 %v850
    %v935 = vunpack.c.l.b16 %v851
    %v936 = vunpack.c.h.b16 %v851
    %v937 = vunpack.c.l.b16 %v852
    %v938 = vunpack.c.h.b16 %v852
    %v939 = vunpack.c.l.b16 %v853
    %v940 = vunpack.c.h.b16 %v853
    %v941 = vunpack.c.l.b16 %v854
    %v942 = vunpack.c.h.b16 %v854
    %v943 = vunpack.c.l.b16 %v855
    %v944 = vunpack.c.h.b16 %v855
    %v945 = vunpack.c.l.b16 %v856
    %v946 = vunpack.c.h.b16 %v856
    %v947 = vunpack.c.l.b16 %v857
    %v948 = vunpack.c.h.b16 %v857
    %v949 = vunpack.c.l.b16 %v858
    %v950 = vunpack.c.h.b16 %v858
    %v951 = vunpack.c.l.b16 %v859
    %v952 = vunpack.c.h.b16 %v859
    %v953 = vunpack.c.l.b16 %v860
    %v954 = vunpack.c.h.b16 %v860
    %v955 = vunpack.c.l.b16 %v861
    %v956 = vunpack.c.h.b16 %v861
    %v957 = vunpack.c.l.b16 %v862
    %v958 = vunpack.c.h.b16 %v862
    %v959 = vpack.c.b16 %v899, %v895
    %v960 = vpack.c.b16 %v900, %v896
    %v961 = vpack.c.b16 %v901, %v897
    %v962 = vpack.c.b16 %v902, %v898
    %v963 = vpack.c.b16 %v907, %v903
    %v964 = vpack.c.b16 %v908, %v904
    %v965 = vpack.c.b16 %v909, %v905
    %v966 = vpack.c.b16 %v910, %v906
    %v967 = vpack.c.b16 %v915, %v911
    %v968 = vpack.c.b16 %v916, %v912
    %v969 = vpack.c.b16 %v917, %v913
    %v970 = vpack.c.b16 %v918, %v914
    %v971 = vpack.c.b16 %v923, %v919
    %v972 = vpack.c.b16 %v924, %v920
    %v973 = vpack.c.b16 %v925, %v921
    %v974 = vpack.c.b16 %v926, %v922
    %v975 = vpack.c.b16 %v931, %v927
    %v976 = vpack.c.b16 %v932, %v928
    %v977 = vpack.c.b16 %v933, %v929
    %v978 = vpack.c.b16 %v934, %v930
    %v979 = vpack.c.b16 %v939, %v935
    %v980 = vpack.c.b16 %v940, %v936
    %v981 = vpack.c.b16 %v941, %v937
    %v982 = vpack.c.b16 %v942, %v938
    %v983 = vpack.c.b16 %v947, %v943
    %v984 = vpack.c.b16 %v948, %v944
    %v985 = vpack.c.b16 %v949, %v945
    %v986 = vpack.c.b16 %v950, %v946
    %v987 = vpack.c.b16 %v955, %v951
    %v988 = vpack.c.b16 %v956, %v952
    %v989 = vpack.c.b16 %v957, %v953
    %v990 = vpack.c.b16 %v958, %v954
    %1023 = vmatprep.subr.bf16.mxu0 %v988
    %1024 = vmatpush1.bf16.msra.mxu0 %v987
    %1025 = vmatprep.subr.bf16.mxu0 %v984
    %1026 = vmatpush1.bf16.msra.mxu0 %v983
    %1027 = vmatprep.subr.bf16.mxu0 %v980
    %1028 = vmatpush1.bf16.msra.mxu0 %v979
    %1029 = vmatprep.subr.bf16.mxu0 %v976
    %1030 = vmatpush1.bf16.msra.mxu0 %v975
    %1031 = vmatprep.subr.bf16.mxu0 %v972
    %1032 = vmatpush1.bf16.msra.mxu0 %v971
    %1033 = vmatprep.subr.bf16.mxu0 %v968
    %1034 = vmatpush1.bf16.msra.mxu0 %v967
    %1035 = vmatprep.subr.bf16.mxu0 %v964
    %1036 = vmatpush1.bf16.msra.mxu0 %v963
    %1037 = vmatprep.subr.bf16.mxu0 %v960
    %1038 = vmatpush1.bf16.msra.mxu0 %v959
    %1039 = vmatprep.subr.bf16.mxu0 0
    %1040 = vmatpush2.bf16.msra.mxu0 0
    %1041 = vmatprep.subr.bf16.mxu0 0
    %1042 = vmatpush2.bf16.msra.mxu0 0
    %1043 = vmatprep.subr.bf16.mxu0 0
    %1044 = vmatpush2.bf16.msra.mxu0 0
    %1045 = vmatprep.subr.bf16.mxu0 0
    %1046 = vmatpush2.bf16.msra.mxu0 0
    %1047 = vmatprep.subr.bf16.mxu0 0
    %1048 = vmatpush2.bf16.msra.mxu0 0
    %1049 = vmatprep.subr.bf16.mxu0 0
    %1050 = vmatpush2.bf16.msra.mxu0 0
    %1051 = vmatprep.subr.bf16.mxu0 0
    %1052 = vmatpush2.bf16.msra.mxu0 0
    %1053 = vmatprep.subr.bf16.mxu0 0
    %1054 = vmatpush2.bf16.msra.mxu0 0
    %1055 = vmatprep.mubr.bf16.mxu0 0
    %1056 = vmatmul.mubr.bf16.gmra.mxu0 %v827
    %v1057 = vpop.f32.mrf.mxu0
    %v1058 = vadd.f32 0.0, %v1057
    %v1059 = vpop.f32.mrf.mxu0
    %v1060 = vadd.f32 0.0, %v1059
    %v1061 = vpop.f32.mrf.mxu0
    %v1062 = vadd.f32 0.0, %v1061
    %v1063 = vpop.f32.mrf.mxu0
    %v1064 = vadd.f32 0.0, %v1063
    %1065 = vmatprep.mubr.bf16.mxu0 0
    %1066 = vmatmul.mubr.bf16.gmra.mxu0 %v828
    %v1067 = vpop.f32.mrf.mxu0
    %v1068 = vadd.f32 0.0, %v1067
    %v1069 = vpop.f32.mrf.mxu0
    %v1070 = vadd.f32 0.0, %v1069
    %v1071 = vpop.f32.mrf.mxu0
    %v1072 = vadd.f32 0.0, %v1071
    %v1073 = vpop.f32.mrf.mxu0
    %v1074 = vadd.f32 0.0, %v1073
    %1075 = vmatprep.mubr.bf16.mxu0 0
    %1076 = vmatmul.mubr.bf16.gmra.mxu0 %v829
    %v1077 = vpop.f32.mrf.mxu0
    %v1078 = vadd.f32 0.0, %v1077
    %v1079 = vpop.f32.mrf.mxu0
    %v1080 = vadd.f32 0.0, %v1079
    %v1081 = vpop.f32.mrf.mxu0
    %v1082 = vadd.f32 0.0, %v1081
    %v1083 = vpop.f32.mrf.mxu0
    %v1084 = vadd.f32 0.0, %v1083
    %1085 = vmatprep.mubr.bf16.mxu0 0
    %1086 = vmatmul.mubr.bf16.gmra.mxu0 %v830
    %v1087 = vpop.f32.mrf.mxu0
    %v1088 = vadd.f32 0.0, %v1087
    %v1089 = vpop.f32.mrf.mxu0
    %v1090 = vadd.f32 0.0, %v1089
    %v1091 = vpop.f32.mrf.mxu0
    %v1092 = vadd.f32 0.0, %v1091
    %v1093 = vpop.f32.mrf.mxu0
    %v1094 = vadd.f32 0.0, %v1093
    %1095 = vdwg.mxu0
    %1096 = vmatprep.subr.bf16.mxu0 %v990
    %1097 = vmatpush1.bf16.msra.mxu0 %v989
    %1098 = vmatprep.subr.bf16.mxu0 %v986
    %1099 = vmatpush1.bf16.msra.mxu0 %v985
    %1100 = vmatprep.subr.bf16.mxu0 %v982
    %1101 = vmatpush1.bf16.msra.mxu0 %v981
    %1102 = vmatprep.subr.bf16.mxu0 %v978
    %1103 = vmatpush1.bf16.msra.mxu0 %v977
    %1104 = vmatprep.subr.bf16.mxu0 %v974
    %1105 = vmatpush1.bf16.msra.mxu0 %v973
    %1106 = vmatprep.subr.bf16.mxu0 %v970
    %1107 = vmatpush1.bf16.msra.mxu0 %v969
    %1108 = vmatprep.subr.bf16.mxu0 %v966
    %1109 = vmatpush1.bf16.msra.mxu0 %v965
    %1110 = vmatprep.subr.bf16.mxu0 %v962
    %1111 = vmatpush1.bf16.msra.mxu0 %v961
    %1112 = vmatprep.subr.bf16.mxu0 0
    %1113 = vmatpush2.bf16.msra.mxu0 0
    %1114 = vmatprep.subr.bf16.mxu0 0
    %1115 = vmatpush2.bf16.msra.mxu0 0
    %1116 = vmatprep.subr.bf16.mxu0 0
    %1117 = vmatpush2.bf16.msra.mxu0 0
    %1118 = vmatprep.subr.bf16.mxu0 0
    %1119 = vmatpush2.bf16.msra.mxu0 0
    %1120 = vmatprep.subr.bf16.mxu0 0
    %1121 = vmatpush2.bf16.msra.mxu0 0
    %1122 = vmatprep.subr.bf16.mxu0 0
    %1123 = vmatpush2.bf16.msra.mxu0 0
    %1124 = vmatprep.subr.bf16.mxu0 0
    %1125 = vmatpush2.bf16.msra.mxu0 0
    %1126 = vmatprep.subr.bf16.mxu0 0
    %1127 = vmatpush2.bf16.msra.mxu0 0
    %1128 = vmatprep.mubr.bf16.mxu0 0
    %1129 = vmatmul.mubr.bf16.gmra.mxu0 %v827
    %v1130 = vpop.f32.mrf.mxu0
    %v1131 = vadd.f32 0.0, %v1130
    %v1132 = vpop.f32.mrf.mxu0
    %v1133 = vadd.f32 0.0, %v1132
    %v1134 = vpop.f32.mrf.mxu0
    %v1135 = vadd.f32 0.0, %v1134
    %v1136 = vpop.f32.mrf.mxu0
    %v1137 = vadd.f32 0.0, %v1136
    %1138 = vmatprep.mubr.bf16.mxu0 0
    %1139 = vmatmul.mubr.bf16.gmra.mxu0 %v828
    %v1140 = vpop.f32.mrf.mxu0
    %v1141 = vadd.f32 0.0, %v1140
    %v1142 = vpop.f32.mrf.mxu0
    %v1143 = vadd.f32 0.0, %v1142
    %v1144 = vpop.f32.mrf.mxu0
    %v1145 = vadd.f32 0.0, %v1144
    %v1146 = vpop.f32.mrf.mxu0
    %v1147 = vadd.f32 0.0, %v1146
    %1148 = vmatprep.mubr.bf16.mxu0 0
    %1149 = vmatmul.mubr.bf16.gmra.mxu0 %v829
    %v1150 = vpop.f32.mrf.mxu0
    %v1151 = vadd.f32 0.0, %v1150
    %v1152 = vpop.f32.mrf.mxu0
    %v1153 = vadd.f32 0.0, %v1152
    %v1154 = vpop.f32.mrf.mxu0
    %v1155 = vadd.f32 0.0, %v1154
    %v1156 = vpop.f32.mrf.mxu0
    %v1157 = vadd.f32 0.0, %v1156
    %1158 = vmatprep.mubr.bf16.mxu0 0
    %1159 = vmatmul.mubr.bf16.gmra.mxu0 %v830
    %v1160 = vpop.f32.mrf.mxu0
    %v1161 = vadd.f32 0.0, %v1160
    %v1162 = vpop.f32.mrf.mxu0
    %v1163 = vadd.f32 0.0, %v1162
    %v1164 = vpop.f32.mrf.mxu0
    %v1165 = vadd.f32 0.0, %v1164
    %v1166 = vpop.f32.mrf.mxu0
    %v1167 = vadd.f32 0.0, %v1166
    %1168 = vdwg.mxu0
    %v1169 = vld [vmem:[%s5] sm:$0x1]
    %v1171 = vlaneseq
    %v1172 = vshrl.u32 %v1171, 7
    %v1173 = vsub.s32 0, %v1172
    %v1174 = vrot.slane %v1169, %v1173
    %v1176 = vadd.f32 %v1058, %v1174
    %v1177 = vadd.f32 %v1062, %v1174
    %v1178 = vadd.f32 %v1068, %v1174
    %v1179 = vadd.f32 %v1072, %v1174
    %v1180 = vadd.f32 %v1078, %v1174
    %v1181 = vadd.f32 %v1082, %v1174
    %v1182 = vadd.f32 %v1088, %v1174
    %v1183 = vadd.f32 %v1092, %v1174
    %v1184 = vpack.c.bf16 %v1064, %v1060
    %v1185 = vpack.c.bf16 %v1074, %v1070
    %v1186 = vpack.c.bf16 %v1084, %v1080
    %v1187 = vpack.c.bf16 %v1094, %v1090
    %1188 = vmatprep.subr.bf16.mxu0 0
    %1189 = vmatpush1.bf16.msra.mxu0 0
    %1190 = vmatprep.subr.bf16.mxu0 0
    %1191 = vmatpush1.bf16.msra.mxu0 0
    %1192 = vmatprep.subr.bf16.mxu0 0
    %1193 = vmatpush1.bf16.msra.mxu0 0
    %1194 = vmatprep.subr.bf16.mxu0 0
    %1195 = vmatpush1.bf16.msra.mxu0 0
    %1196 = vmatprep.subr.bf16.mxu0 0
    %1197 = vmatpush1.bf16.msra.mxu0 %v1187
    %1198 = vmatprep.subr.bf16.mxu0 0
    %1199 = vmatpush1.bf16.msra.mxu0 %v1186
    %1200 = vmatprep.subr.bf16.mxu0 0
    %1201 = vmatpush1.bf16.msra.mxu0 %v1185
    %1202 = vmatprep.subr.bf16.mxu0 0
    %1203 = vmatpush1.bf16.msra.mxu0 %v1184
    %1204 = vmatprep.subr.bf16.mxu0 0
    %1205 = vmatpush2.bf16.msra.mxu0 0
    %1206 = vmatprep.subr.bf16.mxu0 0
    %1207 = vmatpush2.bf16.msra.mxu0 0
    %1208 = vmatprep.subr.bf16.mxu0 0
    %1209 = vmatpush2.bf16.msra.mxu0 0
    %1210 = vmatprep.subr.bf16.mxu0 0
    %1211 = vmatpush2.bf16.msra.mxu0 0
    %1212 = vmatprep.subr.bf16.mxu0 0
    %1213 = vmatpush2.bf16.msra.mxu0 0
    %1214 = vmatprep.subr.bf16.mxu0 0
    %1215 = vmatpush2.bf16.msra.mxu0 0
    %1216 = vmatprep.subr.bf16.mxu0 0
    %1217 = vmatpush2.bf16.msra.mxu0 0
    %1218 = vmatprep.subr.bf16.mxu0 0
    %1219 = vmatpush2.bf16.msra.mxu0 0
    %1220 = vmatprep.mubr.bf16.mxu0 0
    %1221 = vmatmul.mubr.bf16.gmra.mxu0 %v499
    %v1222 = vpop.f32.mrf.mxu0
    %v1223 = vadd.f32 0.0, %v1222
    %v1224 = vpop.f32.mrf.mxu0
    %v1225 = vpop.f32.mrf.mxu0
    %v1226 = vadd.f32 0.0, %v1225
    %v1227 = vpop.f32.mrf.mxu0
    %1228 = vmatprep.mubr.bf16.mxu0 0
    %1229 = vmatmul.mubr.bf16.gmra.mxu0 %v502
    %v1230 = vpop.f32.mrf.mxu0
    %v1231 = vadd.f32 0.0, %v1230
    %v1232 = vpop.f32.mrf.mxu0
    %v1233 = vpop.f32.mrf.mxu0
    %v1234 = vadd.f32 0.0, %v1233
    %v1235 = vpop.f32.mrf.mxu0
    %1236 = vmatprep.mubr.bf16.mxu0 0
    %1237 = vmatmul.mubr.bf16.gmra.mxu0 %v505
    %v1238 = vpop.f32.mrf.mxu0
    %v1239 = vadd.f32 0.0, %v1238
    %v1240 = vpop.f32.mrf.mxu0
    %v1241 = vpop.f32.mrf.mxu0
    %v1242 = vadd.f32 0.0, %v1241
    %v1243 = vpop.f32.mrf.mxu0
    %1244 = vmatprep.mubr.bf16.mxu0 0
    %1245 = vmatmul.mubr.bf16.gmra.mxu0 %v508
    %v1246 = vpop.f32.mrf.mxu0
    %v1247 = vadd.f32 0.0, %v1246
    %v1248 = vpop.f32.mrf.mxu0
    %v1249 = vpop.f32.mrf.mxu0
    %v1250 = vadd.f32 0.0, %v1249
    %v1251 = vpop.f32.mrf.mxu0
    %1252 = vdwg.mxu0
    %v1253 = vadd.f32 %v1176, %v1223
    %v1254 = vadd.f32 %v1177, %v1226
    %v1255 = vadd.f32 %v1178, %v1231
    %v1256 = vadd.f32 %v1179, %v1234
    %v1257 = vadd.f32 %v1180, %v1239
    %v1258 = vadd.f32 %v1181, %v1242
    %v1259 = vadd.f32 %v1182, %v1247
    %v1260 = vadd.f32 %v1183, %v1250
    %v1261 = vpack.c.bf16 %v1135, %v1131
    %v1262 = vpack.c.bf16 %v1145, %v1141
    %v1263 = vpack.c.bf16 %v1155, %v1151
    %v1264 = vpack.c.bf16 %v1165, %v1161
    %1265 = vmatprep.subr.bf16.mxu0 0
    %1266 = vmatpush1.bf16.msra.mxu0 0
    %1267 = vmatprep.subr.bf16.mxu0 0
    %1268 = vmatpush1.bf16.msra.mxu0 0
    %1269 = vmatprep.subr.bf16.mxu0 0
    %1270 = vmatpush1.bf16.msra.mxu0 0
    %1271 = vmatprep.subr.bf16.mxu0 0
    %1272 = vmatpush1.bf16.msra.mxu0 0
    %1273 = vmatprep.subr.bf16.mxu0 0
    %1274 = vmatpush1.bf16.msra.mxu0 %v1264
    %1275 = vmatprep.subr.bf16.mxu0 0
    %1276 = vmatpush1.bf16.msra.mxu0 %v1263
    %1277 = vmatprep.subr.bf16.mxu0 0
    %1278 = vmatpush1.bf16.msra.mxu0 %v1262
    %1279 = vmatprep.subr.bf16.mxu0 0
    %1280 = vmatpush1.bf16.msra.mxu0 %v1261
    %1281 = vmatprep.subr.bf16.mxu0 0
    %1282 = vmatpush2.bf16.msra.mxu0 0
    %1283 = vmatprep.subr.bf16.mxu0 0
    %1284 = vmatpush2.bf16.msra.mxu0 0
    %1285 = vmatprep.subr.bf16.mxu0 0
    %1286 = vmatpush2.bf16.msra.mxu0 0
    %1287 = vmatprep.subr.bf16.mxu0 0
    %1288 = vmatpush2.bf16.msra.mxu0 0
    %1289 = vmatprep.subr.bf16.mxu0 0
    %1290 = vmatpush2.bf16.msra.mxu0 0
    %1291 = vmatprep.subr.bf16.mxu0 0
    %1292 = vmatpush2.bf16.msra.mxu0 0
    %1293 = vmatprep.subr.bf16.mxu0 0
    %1294 = vmatpush2.bf16.msra.mxu0 0
    %1295 = vmatprep.subr.bf16.mxu0 0
    %1296 = vmatpush2.bf16.msra.mxu0 0
    %1297 = vmatprep.mubr.bf16.mxu0 0
    %1298 = vmatmul.mubr.bf16.gmra.mxu0 %v617
    %v1299 = vpop.f32.mrf.mxu0
    %v1300 = vadd.f32 0.0, %v1299
    %v1301 = vpop.f32.mrf.mxu0
    %v1302 = vpop.f32.mrf.mxu0
    %v1303 = vadd.f32 0.0, %v1302
    %v1304 = vpop.f32.mrf.mxu0
    %1305 = vmatprep.mubr.bf16.mxu0 0
    %1306 = vmatmul.mubr.bf16.gmra.mxu0 %v620
    %v1307 = vpop.f32.mrf.mxu0
    %v1308 = vadd.f32 0.0, %v1307
    %v1309 = vpop.f32.mrf.mxu0
    %v1310 = vpop.f32.mrf.mxu0
    %v1311 = vadd.f32 0.0, %v1310
    %v1312 = vpop.f32.mrf.mxu0
    %1313 = vmatprep.mubr.bf16.mxu0 0
    %1314 = vmatmul.mubr.bf16.gmra.mxu0 %v623
    %v1315 = vpop.f32.mrf.mxu0
    %v1316 = vadd.f32 0.0, %v1315
    %v1317 = vpop.f32.mrf.mxu0
    %v1318 = vpop.f32.mrf.mxu0
    %v1319 = vadd.f32 0.0, %v1318
    %v1320 = vpop.f32.mrf.mxu0
    %1321 = vmatprep.mubr.bf16.mxu0 0
    %1322 = vmatmul.mubr.bf16.gmra.mxu0 %v626
    %v1323 = vpop.f32.mrf.mxu0
    %v1324 = vadd.f32 0.0, %v1323
    %v1325 = vpop.f32.mrf.mxu0
    %v1326 = vpop.f32.mrf.mxu0
    %v1327 = vadd.f32 0.0, %v1326
    %v1328 = vpop.f32.mrf.mxu0
    %1329 = vdwg.mxu0
    %v1330 = vadd.f32 %v1253, %v1300
    %v1331 = vadd.f32 %v1254, %v1303
    %v1332 = vadd.f32 %v1255, %v1308
    %v1333 = vadd.f32 %v1256, %v1311
    %v1334 = vadd.f32 %v1257, %v1316
    %v1335 = vadd.f32 %v1258, %v1319
    %v1336 = vadd.f32 %v1259, %v1324
    %v1337 = vadd.f32 %v1260, %v1327
    %v1338 = vpack.c.bf16 %v1137, %v1133
    %v1339 = vpack.c.bf16 %v1147, %v1143
    %v1340 = vpack.c.bf16 %v1157, %v1153
    %v1341 = vpack.c.bf16 %v1167, %v1163
    %1342 = vmatprep.subr.bf16.mxu0 0
    %1343 = vmatpush1.bf16.msra.mxu0 0
    %1344 = vmatprep.subr.bf16.mxu0 0
    %1345 = vmatpush1.bf16.msra.mxu0 0
    %1346 = vmatprep.subr.bf16.mxu0 0
    %1347 = vmatpush1.bf16.msra.mxu0 0
    %1348 = vmatprep.subr.bf16.mxu0 0
    %1349 = vmatpush1.bf16.msra.mxu0 0
    %1350 = vmatprep.subr.bf16.mxu0 0
    %1351 = vmatpush1.bf16.msra.mxu0 %v1341
    %1352 = vmatprep.subr.bf16.mxu0 0
    %1353 = vmatpush1.bf16.msra.mxu0 %v1340
    %1354 = vmatprep.subr.bf16.mxu0 0
    %1355 = vmatpush1.bf16.msra.mxu0 %v1339
    %1356 = vmatprep.subr.bf16.mxu0 0
    %1357 = vmatpush1.bf16.msra.mxu0 %v1338
    %1358 = vmatprep.subr.bf16.mxu0 0
    %1359 = vmatpush2.bf16.msra.mxu0 0
    %1360 = vmatprep.subr.bf16.mxu0 0
    %1361 = vmatpush2.bf16.msra.mxu0 0
    %1362 = vmatprep.subr.bf16.mxu0 0
    %1363 = vmatpush2.bf16.msra.mxu0 0
    %1364 = vmatprep.subr.bf16.mxu0 0
    %1365 = vmatpush2.bf16.msra.mxu0 0
    %1366 = vmatprep.subr.bf16.mxu0 0
    %1367 = vmatpush2.bf16.msra.mxu0 0
    %1368 = vmatprep.subr.bf16.mxu0 0
    %1369 = vmatpush2.bf16.msra.mxu0 0
    %1370 = vmatprep.subr.bf16.mxu0 0
    %1371 = vmatpush2.bf16.msra.mxu0 0
    %1372 = vmatprep.subr.bf16.mxu0 0
    %1373 = vmatpush2.bf16.msra.mxu0 0
    %1374 = vmatprep.mubr.bf16.mxu0 0
    %1375 = vmatmul.mubr.bf16.gmra.mxu0 %v735
    %v1376 = vpop.f32.mrf.mxu0
    %v1377 = vadd.f32 0.0, %v1376
    %v1378 = vpop.f32.mrf.mxu0
    %v1379 = vpop.f32.mrf.mxu0
    %v1380 = vadd.f32 0.0, %v1379
    %v1381 = vpop.f32.mrf.mxu0
    %1382 = vmatprep.mubr.bf16.mxu0 0
    %1383 = vmatmul.mubr.bf16.gmra.mxu0 %v738
    %v1384 = vpop.f32.mrf.mxu0
    %v1385 = vadd.f32 0.0, %v1384
    %v1386 = vpop.f32.mrf.mxu0
    %v1387 = vpop.f32.mrf.mxu0
    %v1388 = vadd.f32 0.0, %v1387
    %v1389 = vpop.f32.mrf.mxu0
    %1390 = vmatprep.mubr.bf16.mxu0 0
    %1391 = vmatmul.mubr.bf16.gmra.mxu0 %v741
    %v1392 = vpop.f32.mrf.mxu0
    %v1393 = vadd.f32 0.0, %v1392
    %v1394 = vpop.f32.mrf.mxu0
    %v1395 = vpop.f32.mrf.mxu0
    %v1396 = vadd.f32 0.0, %v1395
    %v1397 = vpop.f32.mrf.mxu0
    %1398 = vmatprep.mubr.bf16.mxu0 0
    %1399 = vmatmul.mubr.bf16.gmra.mxu0 %v744
    %v1400 = vpop.f32.mrf.mxu0
    %v1401 = vadd.f32 0.0, %v1400
    %v1402 = vpop.f32.mrf.mxu0
    %v1403 = vpop.f32.mrf.mxu0
    %v1404 = vadd.f32 0.0, %v1403
    %v1405 = vpop.f32.mrf.mxu0
    %1406 = vdwg.mxu0
    %v1407 = vadd.f32 %v1330, %v1377
    %v1408 = vadd.f32 %v1331, %v1380
    %v1409 = vadd.f32 %v1332, %v1385
    %v1410 = vadd.f32 %v1333, %v1388
    %v1411 = vadd.f32 %v1334, %v1393
    %v1412 = vadd.f32 %v1335, %v1396
    %v1413 = vadd.f32 %v1336, %v1401
    %v1414 = vadd.f32 %v1337, %v1404
    %v1415 = vmax.f32 %v1407, 0.0
    %v1416 = vmax.f32 %v1408, 0.0
    %v1417 = vmax.f32 %v1409, 0.0
    %v1418 = vmax.f32 %v1410, 0.0
    %v1419 = vmax.f32 %v1411, 0.0
    %v1420 = vmax.f32 %v1412, 0.0
    %v1421 = vmax.f32 %v1413, 0.0
    %v1422 = vmax.f32 %v1414, 0.0
    %1423 = vst [vmem:[#allocation10] sm:$0xff] %v1415
    %1424 = vst [vmem:[#allocation10 + $0x8] sm:$0xff] %v1416
    %1425 = vst [vmem:[#allocation10 + $0x10] sm:$0xff] %v1417
    %1426 = vst [vmem:[#allocation10 + $0x18] sm:$0xff] %v1418
    %1427 = vst [vmem:[#allocation10 + $0x20] sm:$0xff] %v1419
    %1428 = vst [vmem:[#allocation10 + $0x28] sm:$0xff] %v1420
    %1429 = vst [vmem:[#allocation10 + $0x30] sm:$0xff] %v1421
    %1430 = vst [vmem:[#allocation10 + $0x38] sm:$0xff] %v1422
    // Predicated region
    $region42: #{tpu_custom_call.1} parent=1 // pred_check
      _
    $region43: #{tpu_custom_call.1} parent=1 // pred_check_branch
      %1432 = sbr.rel (0) target = $region45
    $region44: #{tpu_custom_call.1} parent=1 // pred_region
      %s1434 = ssub.s32 1024, 1024
      %1435 = vsyncadd [#allocation4], %s1434
      %s1436 = sshll.u32 [#allocation10], 4
      %s1437 = int_to_ptr.vmem [resolvable:$true] %s1436
      %1442 = dma.vmem_to_hbm [thread:$0]  %s1437, 1024, %s6, [#allocation4], 128, 128, 8
    $region45: #{tpu_custom_call.1} parent=1 // pred_fallthru
      _
    // Predicated region
    $region46: #{tpu_custom_call.1} parent=1 // pred_check
      _
    $region47: #{tpu_custom_call.1} parent=1 // pred_check_branch
      %1444 = sbr.rel (0) target = $region49
    $region48: #{tpu_custom_call.1} parent=1 // pred_region
      %1445 = dma.done [#allocation4], 1024
    $region49: #{tpu_custom_call.1} parent=1 // pred_fallthru
      _
    %1446 = vsyncpa [#allocation3], 1
    %1447 = vsyncpa [#allocation6], 1
    %1448 = vsyncpa [#allocation9], 1
    %1449 = vsyncpa [#allocation4], 1

</llo_original>
